<compile_context>
chip_gen: v7x
topology: tpu7x:2x2x1
jax: 0.10.0
libtpu: 0.0.40
codegen_flags: <defaults>
</compile_context>

<pallas_src>
import functools

import jax
import jax.numpy as jnp
from jax.experimental import pallas as pl
from jax.experimental.pallas import tpu as pltpu

# ----- synthetic config (small, TPU-friendly) -----
FEATSIZE   = 128          # cfg.MODEL.FEATSIZE  (backbone output channels)
POOL_HW    = (16, 8)      # IAPHead spatial size
EMB_DIM    = 256          # IAPHead embedding dim
NUM_PERSON = 128          # cfg.REID.NUM_PERSON
AM_SCALE   = 30.0         # AM-Softmax scale s
BN_EPS     = 1e-5
K_PAD      = 32           # im2col K (3*3*3 = 27) zero-padded to sublane-aligned 32
HW         = POOL_HW[0] * POOL_HW[1]   # 128 spatial positions per image


# =====================  fused Pallas kernel  =====================

def _fused_fwd_kernel(*refs, n_img, hw, inv_hw, scale, training):
    """One block of n_img images per grid step:
       im2col-matmul conv + bias + ReLU -> per-image global avg-pool
       -> IAP projection (BN folded) -> [training] scaled-cosine logits."""
    if training:
        a_ref, wc_ref, bc_ref, wp_ref, bp_ref, wn_ref, out_ref = refs
    else:
        a_ref, wc_ref, bc_ref, wp_ref, bp_ref, out_ref = refs

    # conv as one big MXU matmul: (n_img*HW, K_PAD) bf16 @ (K_PAD, C) bf16 -> f32
    conv = jnp.dot(a_ref[...], wc_ref[...], preferred_element_type=jnp.float32)
    conv = jnp.maximum(conv + bc_ref[...], 0.0)                  # bias + ReLU in f32

    # per-image global average pool: (n_img*HW, C) -> (n_img, HW, C) -> (n_img, C)
    cout = conv.shape[1]
    pooled = conv.reshape(n_img, hw, cout).sum(axis=1) * inv_hw  # (n_img, C) f32

    # IAP projection, eval-mode BN folded into wp/bp at setup time (f32 matmul:
    # tiny, keeps parity with the f32 reference)
    emb = jnp.dot(pooled, wp_ref[...],
                  preferred_element_type=jnp.float32) + bp_ref[...]   # (n_img, E)

    if training:
        # AM-Softmax head: s * normalize(emb) @ pre-normalized(W)
        # TODO(synk): additive margin needs labels (applied in the loss);
        #             forward returns scaled cosine logits, matching label-free call.
        xn = emb * jax.lax.rsqrt(jnp.sum(emb * emb, axis=1, keepdims=True) + 1e-12)
        out_ref[...] = scale * jnp.dot(xn, wn_ref[...],
                                       preferred_element_type=jnp.float32)
    else:
        out_ref[...] = emb


# =====================  wrappers (glue)  =====================

def _im2col(x_nhwc, ksize, stride, pad):
    B, H, W, C = x_nhwc.shape
    xp = jnp.pad(x_nhwc, ((0, 0), (pad, pad), (pad, pad), (0, 0)))
    Ho = (H + 2 * pad - ksize) // stride + 1
    Wo = (W + 2 * pad - ksize) // stride + 1
    cols = []
    for i in range(ksize):
        for j in range(ksize):
            cols.append(xp[:, i:i + stride * Ho:stride, j:j + stride * Wo:stride, :])
    patches = jnp.stack(cols, axis=3)                  # (B, Ho, Wo, kh*kw, Cin)
    return patches.reshape(B, Ho * Wo, ksize * ksize * C), Ho, Wo


def prepare_params(params):
    """One-time pre-transform (param setup, not per forward):
       * flatten + K-pad the conv weight (bf16 for the MXU),
       * fold eval-mode BN into the IAP projection weight/bias (kept f32),
       * pre-normalize the AM-softmax weight columns (kept f32)."""
    conv_w = params["conv_w"]                                        # (Cout, Cin, kh, kw)
    w_flat = jnp.transpose(conv_w, (2, 3, 1, 0)).reshape(-1, conv_w.shape[0])
    k = w_flat.shape[0]
    assert k <= K_PAD
    w_flat = jnp.pad(w_flat, ((0, K_PAD - k), (0, 0)))               # (K_PAD, Cout)

    # TODO(synk): BN uses eval-mode running statistics (training batch-stat path omitted).
    h = params["head"]
    inv_std = jax.lax.rsqrt(h["var"] + BN_EPS)                       # (1, E)
    bn_scale = h["gamma"] * inv_std
    w_fold = h["w"] * bn_scale                                       # (F, E)
    b_fold = (h["b"] - h["mean"]) * bn_scale + h["beta"]             # (1, E)

    am_w = params["am_w"]                                            # (E, P)
    am_wn = am_w * jax.lax.rsqrt(jnp.sum(am_w * am_w, axis=0, keepdims=True) + 1e-12)

    return {
        "conv_w": w_flat.astype(jnp.bfloat16),                       # (K_PAD, Cout)
        "conv_b": params["conv_b"].reshape(1, -1).astype(jnp.float32),
        "proj_w": w_fold.astype(jnp.float32),                        # (F, E)  f32 matmul
        "proj_b": b_fold.astype(jnp.float32),                        # (1, E)
        "am_wn":  am_wn.astype(jnp.float32),                         # (E, P)  f32 matmul
    }


def model_forward(x_nchw, prep, training, n_img_max=128, core_parallel=False):
    # TODO(synk): BackboneFactory.produce(cfg) is an unknown (ResNet-like) net;
    #             stand-in: single 3x3 stride-2 conv + ReLU -> (16, 8, FEATSIZE) map.
    x_nhwc = jnp.transpose(x_nchw, (0, 2, 3, 1)).astype(jnp.float32)
    patches, Ho, Wo = _im2col(x_nhwc, ksize=3, stride=2, pad=1)       # (B, HW, 27)
    B, hw, K = patches.shape
    assert (Ho, Wo) == POOL_HW and hw == HW
    assert K <= K_PAD
    patches = jnp.pad(patches, ((0, 0), (0, 0), (0, K_PAD - K))).astype(jnp.bfloat16)

    # ---- choose the per-step image count (multiple of 8 keeps blocks sublane-dense)
    if B <= n_img_max:
        n_img = B                      # single grid step, full-extent output block
    else:
        assert n_img_max % 8 == 0
        n_img = n_img_max
    n_blocks = -(-B // n_img)          # cdiv
    b_pad = n_blocks * n_img
    if b_pad != B:
        patches = jnp.pad(patches, ((0, b_pad - B), (0, 0), (0, 0)))
    patches2d = patches.reshape(b_pad * HW, K_PAD)                    # (B_pad*HW, 32)

    cout = prep["conv_w"].shape[1]
    out_dim = NUM_PERSON if training else EMB_DIM

    # Resident weights/biases (constant index maps).  NOTE: pl.Buffered(1) on
    # these would drop their pointless double buffers; skipped (negligible here).
    in_specs = [
        pl.BlockSpec((n_img * HW, K_PAD), lambda b: (b, 0)),          # patch rows per step
        pl.BlockSpec((K_PAD, cout), lambda b: (0, 0)),                # conv weight
        pl.BlockSpec((1, cout), lambda b: (0, 0)),                    # conv bias
        pl.BlockSpec((cout, EMB_DIM), lambda b: (0, 0)),              # BN-folded projection
        pl.BlockSpec((1, EMB_DIM), lambda b: (0, 0)),                 # BN-folded bias
    ]
    args = [patches2d, prep["conv_w"], prep["conv_b"], prep["proj_w"], prep["proj_b"]]
    if training:
        in_specs.append(pl.BlockSpec((EMB_DIM, NUM_PERSON), lambda b: (0, 0)))
        args.append(prep["am_wn"])

    # On v7x, CORE_PARALLEL shards the image-block axis across both TensorCores
    # (requires >= 2 grid steps); "parallel" is the safe default everywhere else.
    if core_parallel and n_blocks >= 2:
        dim_sem = (pltpu.CORE_PARALLEL,)
    else:
        dim_sem = (pltpu.PARALLEL,)

    out = pl.pallas_call(
        functools.partial(_fused_fwd_kernel, n_img=n_img, hw=HW,
                          inv_hw=1.0 / HW, scale=AM_SCALE, training=training),
        out_shape=jax.ShapeDtypeStruct((b_pad, out_dim), jnp.float32),
        grid=(n_blocks,),
        in_specs=in_specs,
        out_specs=pl.BlockSpec((n_img, out_dim), lambda b: (b, 0)),
        compiler_params=pltpu.CompilerParams(
            dimension_semantics=dim_sem,
            # headroom for the (n_img*HW, C) f32 conv temp when n_img is large;
            # 48 MiB stays below v7x's 64 MiB physical VMEM.
            vmem_limit_bytes=48 * 1024 * 1024),
    )(*args)
    return out[:B]


# =====================  pure-JAX reference (for correctness)  =====================

def reference_forward(x_nchw, params, training):
    x = jnp.transpose(x_nchw, (0, 2, 3, 1)).astype(jnp.float32)
    w = jnp.transpose(params["conv_w"], (2, 3, 1, 0))                 # HWIO
    y = jax.lax.conv_general_dilated(x, w, window_strides=(2, 2),
                                     padding=((1, 1), (1, 1)),
                                     dimension_numbers=("NHWC", "HWIO", "NHWC"))
    y = jnp.maximum(y + params["conv_b"], 0.0)
    pooled = jnp.mean(y, axis=(1, 2))                                 # (B, F)
    h = params["head"]
    lin = pooled @ h["w"] + h["b"]
    emb = (lin - h["mean"]) * jax.lax.rsqrt(h["var"] + BN_EPS) * h["gamma"] + h["beta"]
    if training:
        xn = emb / jnp.linalg.norm(emb, axis=1, keepdims=True)
        wn = params["am_w"] / jnp.linalg.norm(params["am_w"], axis=0, keepdims=True)
        return AM_SCALE * (xn @ wn)
    return emb


def init_params(key):
    ks = jax.random.split(key, 8)
    params = {
        "conv_w": 0.1 * jax.random.normal(ks[0], (FEATSIZE, 3, 3, 3), jnp.float32),
        "conv_b": 0.01 * jax.random.normal(ks[1], (FEATSIZE,), jnp.float32),
        "head": {
            "w": 0.05 * jax.random.normal(ks[2], (FEATSIZE, EMB_DIM), jnp.float32),
            "b": 0.01 * jax.random.normal(ks[3], (1, EMB_DIM), jnp.float32),
            "gamma": 1.0 + 0.1 * jax.random.normal(ks[4], (1, EMB_DIM), jnp.float32),
            "beta": 0.1 * jax.random.normal(ks[5], (1, EMB_DIM), jnp.float32),
            "mean": 0.1 * jax.random.normal(ks[6], (1, EMB_DIM), jnp.float32),
            "var": jnp.abs(jax.random.normal(ks[7], (1, EMB_DIM), jnp.float32)) + 0.5,
        },
        # AM-softmax weight stored as (EMB_DIM, NUM_PERSON)
        "am_w": 0.05 * jax.random.normal(jax.random.PRNGKey(42),
                                         (EMB_DIM, NUM_PERSON), jnp.float32),
    }
    return params


if __name__ == "__main__":
    key = jax.random.PRNGKey(0)
    kx, kp = jax.random.split(key)
    # NCHW input; 32x16 image -> stride-2 backbone -> (16, 8) feature map,
    # matching IAPHead(cfg.MODEL.FEATSIZE, (16, 8), 256).
    x = jax.random.normal(kx, (8, 3, 32, 16), jnp.float32)
    params = init_params(kp)
    prep = prepare_params(params)          # one-time: fold BN, normalize W, cast conv bf16

    fwd_train = jax.jit(functools.partial(model_forward, training=True))
    fwd_eval = jax.jit(functools.partial(model_forward, training=False))

    logits = fwd_train(x, prep)            # (8, NUM_PERSON) scaled cosine logits
    embb = fwd_eval(x, prep)               # (8, EMB_DIM) embedding
    jax.block_until_ready((logits, embb))

    assert logits.shape == (8, NUM_PERSON)
    assert embb.shape == (8, EMB_DIM)
    assert bool(jnp.all(jnp.isfinite(logits))) and bool(jnp.all(jnp.isfinite(embb)))

    # Numerical sanity vs a pure-JAX reference (bf16 conv operands -> loose tols).
    ref_logits = reference_forward(x, params, training=True)
    ref_embb = reference_forward(x, params, training=False)
    assert bool(jnp.allclose(logits, ref_logits, rtol=5e-2, atol=5e-1))
    assert bool(jnp.allclose(embb, ref_embb, rtol=5e-2, atol=5e-2))

    print("KERNEL_OK")
</pallas_src>

<mosaic_0001>
module attributes {stable_mosaic.version = 11 : i64} {
  func.func @_fused_fwd_kernel(%arg0: i32, %arg1: memref<1024x32xbf16, #tpu.memory_space<vmem>>, %arg2: memref<32x128xbf16, #tpu.memory_space<vmem>>, %arg3: memref<1x128xf32, #tpu.memory_space<vmem>>, %arg4: memref<128x256xf32, #tpu.memory_space<vmem>>, %arg5: memref<1x256xf32, #tpu.memory_space<vmem>>, %arg6: memref<256x128xf32, #tpu.memory_space<vmem>>, %arg7: memref<8x128xf32, #tpu.memory_space<vmem>>) attributes {dimension_semantics = [#tpu.dimension_semantics<parallel>], iteration_bounds = array<i64: 1>, scalar_prefetch = 0 : i64, scratch_operands = 0 : i64, tpu.core_type = #tpu.core_type<tc>, window_params = [{transform_indices = @transform_0, window_bounds = array<i64: 1024, 32>}, {pipeline_mode = #tpu.pipeline_mode<synchronous>, transform_indices = @transform_1, window_bounds = array<i64: 32, 128>}, {pipeline_mode = #tpu.pipeline_mode<synchronous>, transform_indices = @transform_2, window_bounds = array<i64: 1, 128>}, {pipeline_mode = #tpu.pipeline_mode<synchronous>, transform_indices = @transform_3, window_bounds = array<i64: 128, 256>}, {pipeline_mode = #tpu.pipeline_mode<synchronous>, transform_indices = @transform_4, window_bounds = array<i64: 1, 256>}, {pipeline_mode = #tpu.pipeline_mode<synchronous>, transform_indices = @transform_5, window_bounds = array<i64: 256, 128>}, {transform_indices = @transform_6, window_bounds = array<i64: 8, 128>}]} {
    %c0 = arith.constant 0 : index
    %c0_0 = arith.constant 0 : index
    %0 = vector.load %arg1[%c0, %c0_0] : memref<1024x32xbf16, #tpu.memory_space<vmem>>, vector<1024x32xbf16>
    %c0_1 = arith.constant 0 : index
    %c0_2 = arith.constant 0 : index
    %1 = vector.load %arg2[%c0_1, %c0_2] : memref<32x128xbf16, #tpu.memory_space<vmem>>, vector<32x128xbf16>
    %cst = arith.constant dense<0.000000e+00> : vector<1024x128xf32>
    %2 = tpu.matmul %0, %1, %cst {dimension_numbers = #tpu.dot_dimension_numbers<[1], [0], [0], [1], [0, 0, 1, 1], [], []>} : vector<1024x32xbf16>, vector<32x128xbf16>, vector<1024x128xf32> -> vector<1024x128xf32>
    %c0_3 = arith.constant 0 : index
    %c0_4 = arith.constant 0 : index
    %3 = vector.load %arg3[%c0_3, %c0_4] : memref<1x128xf32, #tpu.memory_space<vmem>>, vector<1x128xf32>
    %4 = vector.broadcast %3 : vector<1x128xf32> to vector<1024x128xf32>
    %5 = arith.addf %2, %4 : vector<1024x128xf32>
    %cst_5 = arith.constant 0.000000e+00 : f32
    %6 = vector.broadcast %cst_5 : f32 to vector<1024x128xf32>
    %7 = arith.maximumf %5, %6 : vector<1024x128xf32>
    %8 = vector.shape_cast %7 : vector<1024x128xf32> to vector<8x128x128xf32>
    %cst_6 = arith.constant dense<0.000000e+00> : vector<8x128xf32>
    %9 = vector.multi_reduction <add>, %8, %cst_6 [1] : vector<8x128x128xf32> to vector<8x128xf32>
    %cst_7 = arith.constant 7.812500e-03 : f32
    %10 = vector.broadcast %cst_7 : f32 to vector<8x128xf32>
    %11 = arith.mulf %9, %10 : vector<8x128xf32>
    %c0_8 = arith.constant 0 : index
    %c0_9 = arith.constant 0 : index
    %12 = vector.load %arg4[%c0_8, %c0_9] : memref<128x256xf32, #tpu.memory_space<vmem>>, vector<128x256xf32>
    %cst_10 = arith.constant dense<0.000000e+00> : vector<8x256xf32>
    %13 = tpu.matmul %11, %12, %cst_10 {dimension_numbers = #tpu.dot_dimension_numbers<[1], [0], [0], [1], [0, 0, 1, 1], [], []>} : vector<8x128xf32>, vector<128x256xf32>, vector<8x256xf32> -> vector<8x256xf32>
    %c0_11 = arith.constant 0 : index
    %c0_12 = arith.constant 0 : index
    %14 = vector.load %arg5[%c0_11, %c0_12] : memref<1x256xf32, #tpu.memory_space<vmem>>, vector<1x256xf32>
    %15 = vector.broadcast %14 : vector<1x256xf32> to vector<8x256xf32>
    %16 = arith.addf %13, %15 : vector<8x256xf32>
    %17 = arith.mulf %16, %16 : vector<8x256xf32>
    %cst_13 = arith.constant dense<0.000000e+00> : vector<8xf32>
    %18 = vector.multi_reduction <add>, %17, %cst_13 [1] : vector<8x256xf32> to vector<8xf32>
    %19 = vector.shape_cast %18 : vector<8xf32> to vector<8x1xf32>
    %cst_14 = arith.constant 9.99999996E-13 : f32
    %20 = vector.broadcast %cst_14 : f32 to vector<8x1xf32>
    %21 = arith.addf %19, %20 : vector<8x1xf32>
    %22 = math.rsqrt %21 : vector<8x1xf32>
    %23 = vector.broadcast %22 : vector<8x1xf32> to vector<8x256xf32>
    %24 = arith.mulf %16, %23 : vector<8x256xf32>
    %c0_15 = arith.constant 0 : index
    %c0_16 = arith.constant 0 : index
    %25 = vector.load %arg6[%c0_15, %c0_16] : memref<256x128xf32, #tpu.memory_space<vmem>>, vector<256x128xf32>
    %cst_17 = arith.constant dense<0.000000e+00> : vector<8x128xf32>
    %26 = tpu.matmul %24, %25, %cst_17 {dimension_numbers = #tpu.dot_dimension_numbers<[1], [0], [0], [1], [0, 0, 1, 1], [], []>} : vector<8x256xf32>, vector<256x128xf32>, vector<8x128xf32> -> vector<8x128xf32>
    %cst_18 = arith.constant 3.000000e+01 : f32
    %27 = vector.broadcast %cst_18 : f32 to vector<8x128xf32>
    %28 = arith.mulf %27, %26 : vector<8x128xf32>
    %c0_19 = arith.constant 0 : index
    %c0_20 = arith.constant 0 : index
    %29 = vector.load %arg7[%c0_19, %c0_20] : memref<8x128xf32, #tpu.memory_space<vmem>>, vector<8x128xf32>
    tpu.vector_store %arg7[%c0_19, %c0_20], %28 {strides = array<i32>} : memref<8x128xf32, #tpu.memory_space<vmem>>, vector<8x128xf32>,
    return
  }
  func.func @transform_0(%arg0: i32) -> (i32, i32) {
    %c0_i32 = arith.constant 0 : i32
    %c0_i32_0 = arith.constant 0 : i32
    return %arg0, %c0_i32 : i32, i32
  }
  func.func @transform_1(%arg0: i32) -> (i32, i32) {
    %c0_i32 = arith.constant 0 : i32
    %c0_i32_0 = arith.constant 0 : i32
    %c0_i32_1 = arith.constant 0 : i32
    return %c0_i32, %c0_i32_0 : i32, i32
  }
  func.func @transform_2(%arg0: i32) -> (i32, i32) {
    %c0_i32 = arith.constant 0 : i32
    %c0_i32_0 = arith.constant 0 : i32
    %c0_i32_1 = arith.constant 0 : i32
    return %c0_i32, %c0_i32_0 : i32, i32
  }
  func.func @transform_3(%arg0: i32) -> (i32, i32) {
    %c0_i32 = arith.constant 0 : i32
    %c0_i32_0 = arith.constant 0 : i32
    %c0_i32_1 = arith.constant 0 : i32
    return %c0_i32, %c0_i32_0 : i32, i32
  }
  func.func @transform_4(%arg0: i32) -> (i32, i32) {
    %c0_i32 = arith.constant 0 : i32
    %c0_i32_0 = arith.constant 0 : i32
    %c0_i32_1 = arith.constant 0 : i32
    return %c0_i32, %c0_i32_0 : i32, i32
  }
  func.func @transform_5(%arg0: i32) -> (i32, i32) {
    %c0_i32 = arith.constant 0 : i32
    %c0_i32_0 = arith.constant 0 : i32
    %c0_i32_1 = arith.constant 0 : i32
    return %c0_i32, %c0_i32_0 : i32, i32
  }
  func.func @transform_6(%arg0: i32) -> (i32, i32) {
    %c0_i32 = arith.constant 0 : i32
    %c0_i32_0 = arith.constant 0 : i32
    return %arg0, %c0_i32 : i32, i32
  }
}

</mosaic_0001>

<llo_original>
// kernel: model_forward.1
$region0: #{model_forward.1}
  #allocation0 [shape = 'u32[]', space=smem, size = 0x4, offset = 0x4, fixed_abs, tag = 'smem constant byte address 0x4 - core index']
  #allocation1 [shape = 'u32[144,128]{1,0:T(1,128)}', space=vmem, size = 0x12000, scoped, tag = 'internal scratch']
  %s0 = inlined_call_operand.vmem [shape: bf16[1024,32], index: 0, kind: input, shape index: {}]
  %s1 = inlined_call_operand.vmem [shape: bf16[32,128], index: 1, kind: input, shape index: {}]
  %s2 = inlined_call_operand.vmem [shape: f32[1,128], index: 2, kind: input, shape index: {}]
  %s3 = inlined_call_operand.vmem [shape: f32[128,256], index: 3, kind: input, shape index: {}]
  %s4 = inlined_call_operand.vmem [shape: f32[1,256], index: 4, kind: input, shape index: {}]
  %s5 = inlined_call_operand.vmem [shape: f32[256,128], index: 5, kind: input, shape index: {}]
  %s6 = inlined_call_operand.hbm [shape: f32[8,128], index: 6, kind: output, shape index: {}]
  %s7 = sld [smem:[#allocation0]]
  $region34: #{model_forward.1} parent=0
    _
  %s9 = ssub.s32 1, %s7
  %s10 = scalar_select 0, %s9, %s7
  $region1: #{model_forward.1} parent=0
    #allocation2 [shape = 'u8[4096]{0}', space=vmem, size = 0x1000, scoped, tag = 'output window, operand 0, single buffered']
    #allocation3 [shape = 's32[1]{0}', space=sflag, size = 0x4, scoped, tag = 'scoped memory for model_forward.1']
    %11 = vsyncpa [#allocation3], 0
    // Predicated region
    $region2: #{model_forward.1} parent=1 // pred_check
      _
    $region3: #{model_forward.1} parent=1 // pred_check_branch
      %13 = sbr.rel (0) target = $region5
    $region4: #{model_forward.1} parent=1 // pred_region
      _
    $region5: #{model_forward.1} parent=1 // pred_fallthru
      _
    // Predicated region
    $region6: #{model_forward.1} parent=1 // pred_check
      _
    $region7: #{model_forward.1} parent=1 // pred_check_branch
      %15 = sbr.rel (0) target = $region9
    $region8: #{model_forward.1} parent=1 // pred_region
      _
    $region9: #{model_forward.1} parent=1 // pred_fallthru
      _
    // Predicated region
    $region10: #{model_forward.1} parent=1 // pred_check
      _
    $region11: #{model_forward.1} parent=1 // pred_check_branch
      %17 = sbr.rel (0) target = $region13
    $region12: #{model_forward.1} parent=1 // pred_region
      _
    $region13: #{model_forward.1} parent=1 // pred_fallthru
      _
    // Predicated region
    $region14: #{model_forward.1} parent=1 // pred_check
      _
    $region15: #{model_forward.1} parent=1 // pred_check_branch
      %19 = sbr.rel (0) target = $region17
    $region16: #{model_forward.1} parent=1 // pred_region
      _
    $region17: #{model_forward.1} parent=1 // pred_fallthru
      _
    // Predicated region
    $region18: #{model_forward.1} parent=1 // pred_check
      _
    $region19: #{model_forward.1} parent=1 // pred_check_branch
      %21 = sbr.rel (0) target = $region21
    $region20: #{model_forward.1} parent=1 // pred_region
      _
    $region21: #{model_forward.1} parent=1 // pred_fallthru
      _
    // Predicated region
    $region22: #{model_forward.1} parent=1 // pred_check
      _
    $region23: #{model_forward.1} parent=1 // pred_check_branch
      %23 = sbr.rel (0) target = $region25
    $region24: #{model_forward.1} parent=1 // pred_region
      _
    $region25: #{model_forward.1} parent=1 // pred_fallthru
      _
    %v25 = vld [vmem:[%s0] sm:$0xf]
    %v26 = vld [vmem:[%s0 + $0x4] sm:$0xf]
    %v27 = vld [vmem:[%s0 + $0x8] sm:$0xf]
    %v28 = vld [vmem:[%s0 + $0xc] sm:$0xf]
    %v29 = vld [vmem:[%s0 + $0x10] sm:$0xf]
    %v30 = vld [vmem:[%s0 + $0x14] sm:$0xf]
    %v31 = vld [vmem:[%s0 + $0x18] sm:$0xf]
    %v32 = vld [vmem:[%s0 + $0x1c] sm:$0xf]
    %v33 = vld [vmem:[%s0 + $0x20] sm:$0xf]
    %v34 = vld [vmem:[%s0 + $0x24] sm:$0xf]
    %v35 = vld [vmem:[%s0 + $0x28] sm:$0xf]
    %v36 = vld [vmem:[%s0 + $0x2c] sm:$0xf]
    %v37 = vld [vmem:[%s0 + $0x30] sm:$0xf]
    %v38 = vld [vmem:[%s0 + $0x34] sm:$0xf]
    %v39 = vld [vmem:[%s0 + $0x38] sm:$0xf]
    %v40 = vld [vmem:[%s0 + $0x3c] sm:$0xf]
    %v41 = vld [vmem:[%s0 + $0x40] sm:$0xf]
    %v42 = vld [vmem:[%s0 + $0x44] sm:$0xf]
    %v43 = vld [vmem:[%s0 + $0x48] sm:$0xf]
    %v44 = vld [vmem:[%s0 + $0x4c] sm:$0xf]
    %v45 = vld [vmem:[%s0 + $0x50] sm:$0xf]
    %v46 = vld [vmem:[%s0 + $0x54] sm:$0xf]
    %v47 = vld [vmem:[%s0 + $0x58] sm:$0xf]
    %v48 = vld [vmem:[%s0 + $0x5c] sm:$0xf]
    %v49 = vld [vmem:[%s0 + $0x60] sm:$0xf]
    %v50 = vld [vmem:[%s0 + $0x64] sm:$0xf]
    %v51 = vld [vmem:[%s0 + $0x68] sm:$0xf]
    %v52 = vld [vmem:[%s0 + $0x6c] sm:$0xf]
    %v53 = vld [vmem:[%s0 + $0x70] sm:$0xf]
    %v54 = vld [vmem:[%s0 + $0x74] sm:$0xf]
    %v55 = vld [vmem:[%s0 + $0x78] sm:$0xf]
    %v56 = vld [vmem:[%s0 + $0x7c] sm:$0xf]
    %v57 = vld [vmem:[%s0 + $0x80] sm:$0xf]
    %v58 = vld [vmem:[%s0 + $0x84] sm:$0xf]
    %v59 = vld [vmem:[%s0 + $0x88] sm:$0xf]
    %v60 = vld [vmem:[%s0 + $0x8c] sm:$0xf]
    %v61 = vld [vmem:[%s0 + $0x90] sm:$0xf]
    %v62 = vld [vmem:[%s0 + $0x94] sm:$0xf]
    %v63 = vld [vmem:[%s0 + $0x98] sm:$0xf]
    %v64 = vld [vmem:[%s0 + $0x9c] sm:$0xf]
    %v65 = vld [vmem:[%s0 + $0xa0] sm:$0xf]
    %v66 = vld [vmem:[%s0 + $0xa4] sm:$0xf]
    %v67 = vld [vmem:[%s0 + $0xa8] sm:$0xf]
    %v68 = vld [vmem:[%s0 + $0xac] sm:$0xf]
    %v69 = vld [vmem:[%s0 + $0xb0] sm:$0xf]
    %v70 = vld [vmem:[%s0 + $0xb4] sm:$0xf]
    %v71 = vld [vmem:[%s0 + $0xb8] sm:$0xf]
    %v72 = vld [vmem:[%s0 + $0xbc] sm:$0xf]
    %v73 = vld [vmem:[%s0 + $0xc0] sm:$0xf]
    %v74 = vld [vmem:[%s0 + $0xc4] sm:$0xf]
    %v75 = vld [vmem:[%s0 + $0xc8] sm:$0xf]
    %v76 = vld [vmem:[%s0 + $0xcc] sm:$0xf]
    %v77 = vld [vmem:[%s0 + $0xd0] sm:$0xf]
    %v78 = vld [vmem:[%s0 + $0xd4] sm:$0xf]
    %v79 = vld [vmem:[%s0 + $0xd8] sm:$0xf]
    %v80 = vld [vmem:[%s0 + $0xdc] sm:$0xf]
    %v81 = vld [vmem:[%s0 + $0xe0] sm:$0xf]
    %v82 = vld [vmem:[%s0 + $0xe4] sm:$0xf]
    %v83 = vld [vmem:[%s0 + $0xe8] sm:$0xf]
    %v84 = vld [vmem:[%s0 + $0xec] sm:$0xf]
    %v85 = vld [vmem:[%s0 + $0xf0] sm:$0xf]
    %v86 = vld [vmem:[%s0 + $0xf4] sm:$0xf]
    %v87 = vld [vmem:[%s0 + $0xf8] sm:$0xf]
    %v88 = vld [vmem:[%s0 + $0xfc] sm:$0xf]
    %v89 = vld [vmem:[%s0 + $0x100] sm:$0xf]
    %v90 = vld [vmem:[%s0 + $0x104] sm:$0xf]
    %v91 = vld [vmem:[%s0 + $0x108] sm:$0xf]
    %v92 = vld [vmem:[%s0 + $0x10c] sm:$0xf]
    %v93 = vld [vmem:[%s0 + $0x110] sm:$0xf]
    %v94 = vld [vmem:[%s0 + $0x114] sm:$0xf]
    %v95 = vld [vmem:[%s0 + $0x118] sm:$0xf]
    %v96 = vld [vmem:[%s0 + $0x11c] sm:$0xf]
    %v97 = vld [vmem:[%s0 + $0x120] sm:$0xf]
    %v98 = vld [vmem:[%s0 + $0x124] sm:$0xf]
    %v99 = vld [vmem:[%s0 + $0x128] sm:$0xf]
    %v100 = vld [vmem:[%s0 + $0x12c] sm:$0xf]
    %v101 = vld [vmem:[%s0 + $0x130] sm:$0xf]
    %v102 = vld [vmem:[%s0 + $0x134] sm:$0xf]
    %v103 = vld [vmem:[%s0 + $0x138] sm:$0xf]
    %v104 = vld [vmem:[%s0 + $0x13c] sm:$0xf]
    %v105 = vld [vmem:[%s0 + $0x140] sm:$0xf]
    %v106 = vld [vmem:[%s0 + $0x144] sm:$0xf]
    %v107 = vld [vmem:[%s0 + $0x148] sm:$0xf]
    %v108 = vld [vmem:[%s0 + $0x14c] sm:$0xf]
    %v109 = vld [vmem:[%s0 + $0x150] sm:$0xf]
    %v110 = vld [vmem:[%s0 + $0x154] sm:$0xf]
    %v111 = vld [vmem:[%s0 + $0x158] sm:$0xf]
    %v112 = vld [vmem:[%s0 + $0x15c] sm:$0xf]
    %v113 = vld [vmem:[%s0 + $0x160] sm:$0xf]
    %v114 = vld [vmem:[%s0 + $0x164] sm:$0xf]
    %v115 = vld [vmem:[%s0 + $0x168] sm:$0xf]
    %v116 = vld [vmem:[%s0 + $0x16c] sm:$0xf]
    %v117 = vld [vmem:[%s0 + $0x170] sm:$0xf]
    %v118 = vld [vmem:[%s0 + $0x174] sm:$0xf]
    %v119 = vld [vmem:[%s0 + $0x178] sm:$0xf]
    %v120 = vld [vmem:[%s0 + $0x17c] sm:$0xf]
    %v121 = vld [vmem:[%s0 + $0x180] sm:$0xf]
    %v122 = vld [vmem:[%s0 + $0x184] sm:$0xf]
    %v123 = vld [vmem:[%s0 + $0x188] sm:$0xf]
    %v124 = vld [vmem:[%s0 + $0x18c] sm:$0xf]
    %v125 = vld [vmem:[%s0 + $0x190] sm:$0xf]
    %v126 = vld [vmem:[%s0 + $0x194] sm:$0xf]
    %v127 = vld [vmem:[%s0 + $0x198] sm:$0xf]
    %v128 = vld [vmem:[%s0 + $0x19c] sm:$0xf]
    %v129 = vld [vmem:[%s0 + $0x1a0] sm:$0xf]
    %v130 = vld [vmem:[%s0 + $0x1a4] sm:$0xf]
    %v131 = vld [vmem:[%s0 + $0x1a8] sm:$0xf]
    %v132 = vld [vmem:[%s0 + $0x1ac] sm:$0xf]
    %v133 = vld [vmem:[%s0 + $0x1b0] sm:$0xf]
    %v134 = vld [vmem:[%s0 + $0x1b4] sm:$0xf]
    %v135 = vld [vmem:[%s0 + $0x1b8] sm:$0xf]
    %v136 = vld [vmem:[%s0 + $0x1bc] sm:$0xf]
    %v137 = vld [vmem:[%s0 + $0x1c0] sm:$0xf]
    %v138 = vld [vmem:[%s0 + $0x1c4] sm:$0xf]
    %v139 = vld [vmem:[%s0 + $0x1c8] sm:$0xf]
    %v140 = vld [vmem:[%s0 + $0x1cc] sm:$0xf]
    %v141 = vld [vmem:[%s0 + $0x1d0] sm:$0xf]
    %v142 = vld [vmem:[%s0 + $0x1d4] sm:$0xf]
    %v143 = vld [vmem:[%s0 + $0x1d8] sm:$0xf]
    %v144 = vld [vmem:[%s0 + $0x1dc] sm:$0xf]
    %v145 = vld [vmem:[%s0 + $0x1e0] sm:$0xf]
    %v146 = vld [vmem:[%s0 + $0x1e4] sm:$0xf]
    %v147 = vld [vmem:[%s0 + $0x1e8] sm:$0xf]
    %v148 = vld [vmem:[%s0 + $0x1ec] sm:$0xf]
    %v149 = vld [vmem:[%s0 + $0x1f0] sm:$0xf]
    %v150 = vld [vmem:[%s0 + $0x1f4] sm:$0xf]
    %v151 = vld [vmem:[%s0 + $0x1f8] sm:$0xf]
    %v152 = vld [vmem:[%s0 + $0x1fc] sm:$0xf]
    %v153 = vld [vmem:[%s1] sm:$0xf]
    %v154 = vld [vmem:[%s1 + $0x4] sm:$0xf]
    %v155 = vld [vmem:[%s1 + $0x8] sm:$0xf]
    %v156 = vld [vmem:[%s1 + $0xc] sm:$0xf]
    %v157 = vld [vmem:[%s2] sm:$0x1]
    %v159 = vlaneseq
    %v160 = vshrl.u32 %v159, 7
    %v161 = vsub.s32 0, %v160
    %v162 = vrot.slane %v157, %v161
    %v292 = vunpack.c.l.b16 %v25
    %v293 = vunpack.c.l.b16 %v26
    %v294 = vunpack.c.l.b16 %v27
    %v295 = vunpack.c.l.b16 %v28
    %v296 = vunpack.c.l.b16 %v29
    %v297 = vunpack.c.l.b16 %v30
    %v298 = vunpack.c.l.b16 %v31
    %v299 = vunpack.c.l.b16 %v32
    %v300 = vunpack.c.l.b16 %v33
    %v301 = vunpack.c.l.b16 %v34
    %v302 = vunpack.c.l.b16 %v35
    %v303 = vunpack.c.l.b16 %v36
    %v304 = vunpack.c.l.b16 %v37
    %v305 = vunpack.c.l.b16 %v38
    %v306 = vunpack.c.l.b16 %v39
    %v307 = vunpack.c.l.b16 %v40
    %v308 = vunpack.c.l.b16 %v41
    %v309 = vunpack.c.l.b16 %v42
    %v310 = vunpack.c.l.b16 %v43
    %v311 = vunpack.c.l.b16 %v44
    %v312 = vunpack.c.l.b16 %v45
    %v313 = vunpack.c.l.b16 %v46
    %v314 = vunpack.c.l.b16 %v47
    %v315 = vunpack.c.l.b16 %v48
    %v316 = vunpack.c.l.b16 %v49
    %v317 = vunpack.c.l.b16 %v50
    %v318 = vunpack.c.l.b16 %v51
    %v319 = vunpack.c.l.b16 %v52
    %v320 = vunpack.c.l.b16 %v53
    %v321 = vunpack.c.l.b16 %v54
    %v322 = vunpack.c.l.b16 %v55
    %v323 = vunpack.c.l.b16 %v56
    %v324 = vunpack.c.l.b16 %v57
    %v325 = vunpack.c.l.b16 %v58
    %v326 = vunpack.c.l.b16 %v59
    %v327 = vunpack.c.l.b16 %v60
    %v328 = vunpack.c.l.b16 %v61
    %v329 = vunpack.c.l.b16 %v62
    %v330 = vunpack.c.l.b16 %v63
    %v331 = vunpack.c.l.b16 %v64
    %v332 = vunpack.c.l.b16 %v65
    %v333 = vunpack.c.l.b16 %v66
    %v334 = vunpack.c.l.b16 %v67
    %v335 = vunpack.c.l.b16 %v68
    %v336 = vunpack.c.l.b16 %v69
    %v337 = vunpack.c.l.b16 %v70
    %v338 = vunpack.c.l.b16 %v71
    %v339 = vunpack.c.l.b16 %v72
    %v340 = vunpack.c.l.b16 %v73
    %v341 = vunpack.c.l.b16 %v74
    %v342 = vunpack.c.l.b16 %v75
    %v343 = vunpack.c.l.b16 %v76
    %v344 = vunpack.c.l.b16 %v77
    %v345 = vunpack.c.l.b16 %v78
    %v346 = vunpack.c.l.b16 %v79
    %v347 = vunpack.c.l.b16 %v80
    %v348 = vunpack.c.l.b16 %v81
    %v349 = vunpack.c.l.b16 %v82
    %v350 = vunpack.c.l.b16 %v83
    %v351 = vunpack.c.l.b16 %v84
    %v352 = vunpack.c.l.b16 %v85
    %v353 = vunpack.c.l.b16 %v86
    %v354 = vunpack.c.l.b16 %v87
    %v355 = vunpack.c.l.b16 %v88
    %v356 = vunpack.c.l.b16 %v89
    %v357 = vunpack.c.l.b16 %v90
    %v358 = vunpack.c.l.b16 %v91
    %v359 = vunpack.c.l.b16 %v92
    %v360 = vunpack.c.l.b16 %v93
    %v361 = vunpack.c.l.b16 %v94
    %v362 = vunpack.c.l.b16 %v95
    %v363 = vunpack.c.l.b16 %v96
    %v364 = vunpack.c.l.b16 %v97
    %v365 = vunpack.c.l.b16 %v98
    %v366 = vunpack.c.l.b16 %v99
    %v367 = vunpack.c.l.b16 %v100
    %v368 = vunpack.c.l.b16 %v101
    %v369 = vunpack.c.l.b16 %v102
    %v370 = vunpack.c.l.b16 %v103
    %v371 = vunpack.c.l.b16 %v104
    %v372 = vunpack.c.l.b16 %v105
    %v373 = vunpack.c.l.b16 %v106
    %v374 = vunpack.c.l.b16 %v107
    %v375 = vunpack.c.l.b16 %v108
    %v376 = vunpack.c.l.b16 %v109
    %v377 = vunpack.c.l.b16 %v110
    %v378 = vunpack.c.l.b16 %v111
    %v379 = vunpack.c.l.b16 %v112
    %v380 = vunpack.c.l.b16 %v113
    %v381 = vunpack.c.l.b16 %v114
    %v382 = vunpack.c.l.b16 %v115
    %v383 = vunpack.c.l.b16 %v116
    %v384 = vunpack.c.l.b16 %v117
    %v385 = vunpack.c.l.b16 %v118
    %v386 = vunpack.c.l.b16 %v119
    %v387 = vunpack.c.l.b16 %v120
    %v388 = vunpack.c.l.b16 %v121
    %v389 = vunpack.c.l.b16 %v122
    %v390 = vunpack.c.l.b16 %v123
    %v391 = vunpack.c.l.b16 %v124
    %v392 = vunpack.c.l.b16 %v125
    %v393 = vunpack.c.l.b16 %v126
    %v394 = vunpack.c.l.b16 %v127
    %v395 = vunpack.c.l.b16 %v128
    %v396 = vunpack.c.l.b16 %v129
    %v397 = vunpack.c.l.b16 %v130
    %v398 = vunpack.c.l.b16 %v131
    %v399 = vunpack.c.l.b16 %v132
    %v400 = vunpack.c.l.b16 %v133
    %v401 = vunpack.c.l.b16 %v134
    %v402 = vunpack.c.l.b16 %v135
    %v403 = vunpack.c.l.b16 %v136
    %v404 = vunpack.c.l.b16 %v137
    %v405 = vunpack.c.l.b16 %v138
    %v406 = vunpack.c.l.b16 %v139
    %v407 = vunpack.c.l.b16 %v140
    %v408 = vunpack.c.l.b16 %v141
    %v409 = vunpack.c.l.b16 %v142
    %v410 = vunpack.c.l.b16 %v143
    %v411 = vunpack.c.l.b16 %v144
    %v412 = vunpack.c.l.b16 %v145
    %v413 = vunpack.c.l.b16 %v146
    %v414 = vunpack.c.l.b16 %v147
    %v415 = vunpack.c.l.b16 %v148
    %v416 = vunpack.c.l.b16 %v149
    %v417 = vunpack.c.l.b16 %v150
    %v418 = vunpack.c.l.b16 %v151
    %v419 = vunpack.c.l.b16 %v152
    %v420 = vpack.c.b16 %v293, %v292
    %v421 = vpack.c.b16 %v295, %v294
    %v422 = vpack.c.b16 %v297, %v296
    %v423 = vpack.c.b16 %v299, %v298
    %v424 = vpack.c.b16 %v301, %v300
    %v425 = vpack.c.b16 %v303, %v302
    %v426 = vpack.c.b16 %v305, %v304
    %v427 = vpack.c.b16 %v307, %v306
    %v428 = vpack.c.b16 %v309, %v308
    %v429 = vpack.c.b16 %v311, %v310
    %v430 = vpack.c.b16 %v313, %v312
    %v431 = vpack.c.b16 %v315, %v314
    %v432 = vpack.c.b16 %v317, %v316
    %v433 = vpack.c.b16 %v319, %v318
    %v434 = vpack.c.b16 %v321, %v320
    %v435 = vpack.c.b16 %v323, %v322
    %v436 = vpack.c.b16 %v325, %v324
    %v437 = vpack.c.b16 %v327, %v326
    %v438 = vpack.c.b16 %v329, %v328
    %v439 = vpack.c.b16 %v331, %v330
    %v440 = vpack.c.b16 %v333, %v332
    %v441 = vpack.c.b16 %v335, %v334
    %v442 = vpack.c.b16 %v337, %v336
    %v443 = vpack.c.b16 %v339, %v338
    %v444 = vpack.c.b16 %v341, %v340
    %v445 = vpack.c.b16 %v343, %v342
    %v446 = vpack.c.b16 %v345, %v344
    %v447 = vpack.c.b16 %v347, %v346
    %v448 = vpack.c.b16 %v349, %v348
    %v449 = vpack.c.b16 %v351, %v350
    %v450 = vpack.c.b16 %v353, %v352
    %v451 = vpack.c.b16 %v355, %v354
    %v452 = vpack.c.b16 %v357, %v356
    %v453 = vpack.c.b16 %v359, %v358
    %v454 = vpack.c.b16 %v361, %v360
    %v455 = vpack.c.b16 %v363, %v362
    %v456 = vpack.c.b16 %v365, %v364
    %v457 = vpack.c.b16 %v367, %v366
    %v458 = vpack.c.b16 %v369, %v368
    %v459 = vpack.c.b16 %v371, %v370
    %v460 = vpack.c.b16 %v373, %v372
    %v461 = vpack.c.b16 %v375, %v374
    %v462 = vpack.c.b16 %v377, %v376
    %v463 = vpack.c.b16 %v379, %v378
    %v464 = vpack.c.b16 %v381, %v380
    %v465 = vpack.c.b16 %v383, %v382
    %v466 = vpack.c.b16 %v385, %v384
    %v467 = vpack.c.b16 %v387, %v386
    %v468 = vpack.c.b16 %v389, %v388
    %v469 = vpack.c.b16 %v391, %v390
    %v470 = vpack.c.b16 %v393, %v392
    %v471 = vpack.c.b16 %v395, %v394
    %v472 = vpack.c.b16 %v397, %v396
    %v473 = vpack.c.b16 %v399, %v398
    %v474 = vpack.c.b16 %v401, %v400
    %v475 = vpack.c.b16 %v403, %v402
    %v476 = vpack.c.b16 %v405, %v404
    %v477 = vpack.c.b16 %v407, %v406
    %v478 = vpack.c.b16 %v409, %v408
    %v479 = vpack.c.b16 %v411, %v410
    %v480 = vpack.c.b16 %v413, %v412
    %v481 = vpack.c.b16 %v415, %v414
    %v482 = vpack.c.b16 %v417, %v416
    %v483 = vpack.c.b16 %v419, %v418
    %v488 = vunpack.c.l.b16 %v153
    %v489 = vunpack.c.l.b16 %v154
    %v490 = vunpack.c.l.b16 %v155
    %v491 = vunpack.c.l.b16 %v156
    %v492 = vpack.c.b16 %v489, %v488
    %v493 = vpack.c.b16 %v491, %v490
    %vm496 = vcmask 261120
    %v498 = vsel %vm496, %v420, 0
    %v501 = vsel %vm496, %v421, 0
    %v504 = vsel %vm496, %v422, 0
    %v507 = vsel %vm496, %v423, 0
    %v510 = vsel %vm496, %v424, 0
    %v513 = vsel %vm496, %v425, 0
    %v516 = vsel %vm496, %v426, 0
    %v519 = vsel %vm496, %v427, 0
    %v522 = vsel %vm496, %v428, 0
    %v525 = vsel %vm496, %v429, 0
    %v528 = vsel %vm496, %v430, 0
    %v531 = vsel %vm496, %v431, 0
    %v534 = vsel %vm496, %v432, 0
    %v537 = vsel %vm496, %v433, 0
    %v540 = vsel %vm496, %v434, 0
    %v543 = vsel %vm496, %v435, 0
    %v546 = vsel %vm496, %v436, 0
    %v549 = vsel %vm496, %v437, 0
    %v552 = vsel %vm496, %v438, 0
    %v555 = vsel %vm496, %v439, 0
    %v558 = vsel %vm496, %v440, 0
    %v561 = vsel %vm496, %v441, 0
    %v564 = vsel %vm496, %v442, 0
    %v567 = vsel %vm496, %v443, 0
    %v570 = vsel %vm496, %v444, 0
    %v573 = vsel %vm496, %v445, 0
    %v576 = vsel %vm496, %v446, 0
    %v579 = vsel %vm496, %v447, 0
    %v582 = vsel %vm496, %v448, 0
    %v585 = vsel %vm496, %v449, 0
    %v588 = vsel %vm496, %v450, 0
    %v591 = vsel %vm496, %v451, 0
    %v594 = vsel %vm496, %v452, 0
    %v597 = vsel %vm496, %v453, 0
    %v600 = vsel %vm496, %v454, 0
    %v603 = vsel %vm496, %v455, 0
    %v606 = vsel %vm496, %v456, 0
    %v609 = vsel %vm496, %v457, 0
    %v612 = vsel %vm496, %v458, 0
    %v615 = vsel %vm496, %v459, 0
    %v618 = vsel %vm496, %v460, 0
    %v621 = vsel %vm496, %v461, 0
    %v624 = vsel %vm496, %v462, 0
    %v627 = vsel %vm496, %v463, 0
    %v630 = vsel %vm496, %v464, 0
    %v633 = vsel %vm496, %v465, 0
    %v636 = vsel %vm496, %v466, 0
    %v639 = vsel %vm496, %v467, 0
    %v642 = vsel %vm496, %v468, 0
    %v645 = vsel %vm496, %v469, 0
    %v648 = vsel %vm496, %v470, 0
    %v651 = vsel %vm496, %v471, 0
    %v654 = vsel %vm496, %v472, 0
    %v657 = vsel %vm496, %v473, 0
    %v660 = vsel %vm496, %v474, 0
    %v663 = vsel %vm496, %v475, 0
    %v666 = vsel %vm496, %v476, 0
    %v669 = vsel %vm496, %v477, 0
    %v672 = vsel %vm496, %v478, 0
    %v675 = vsel %vm496, %v479, 0
    %v678 = vsel %vm496, %v480, 0
    %v681 = vsel %vm496, %v481, 0
    %v684 = vsel %vm496, %v482, 0
    %v687 = vsel %vm496, %v483, 0
    %689 = vmatprep.subr.bf16.mxu0 0
    %690 = vmatpush1.bf16.msra.mxu0 %v492
    %691 = vmatprep.subr.bf16.mxu0 0
    %692 = vmatpush1.bf16.msra.mxu0 %v493
    %693 = vmatprep.subr.bf16.mxu0 0
    %694 = vmatpush1.bf16.msra.mxu0 0
    %695 = vmatprep.subr.bf16.mxu0 0
    %696 = vmatpush1.bf16.msra.mxu0 0
    %697 = vmatprep.subr.bf16.mxu0 0
    %698 = vmatpush1.bf16.msra.mxu0 0
    %699 = vmatprep.subr.bf16.mxu0 0
    %700 = vmatpush1.bf16.msra.mxu0 0
    %701 = vmatprep.subr.bf16.mxu0 0
    %702 = vmatpush1.bf16.msra.mxu0 0
    %703 = vmatprep.subr.bf16.mxu0 0
    %704 = vmatpush1.bf16.msra.mxu0 0
    %705 = vmatprep.subr.bf16.mxu0 0
    %706 = vmatpush1.bf16.msra.mxu0 0
    %707 = vmatprep.subr.bf16.mxu0 0
    %708 = vmatpush1.bf16.msra.mxu0 0
    %709 = vmatprep.subr.bf16.mxu0 0
    %710 = vmatpush1.bf16.msra.mxu0 0
    %711 = vmatprep.subr.bf16.mxu0 0
    %712 = vmatpush1.bf16.msra.mxu0 0
    %713 = vmatprep.subr.bf16.mxu0 0
    %714 = vmatpush1.bf16.msra.mxu0 0
    %715 = vmatprep.subr.bf16.mxu0 0
    %716 = vmatpush1.bf16.msra.mxu0 0
    %717 = vmatprep.subr.bf16.mxu0 0
    %718 = vmatpush1.bf16.msra.mxu0 0
    %719 = vmatprep.subr.bf16.mxu0 0
    %720 = vmatpush1.bf16.msra.mxu0 0
    %721 = vmatprep.mubr.bf16.mxu0 0
    %722 = vmatmul.mubr.bf16.gmra.mrb[0].mxu0 %v498
    %v723 = vpop.f32.mrb[0].mxu0
    %v724 = vadd.f32 %v162, %v723
    %v725 = vpop.f32.mrb[0].mxu0
    %v726 = vpop.f32.mrb[0].mxu0
    %v727 = vadd.f32 %v162, %v726
    %v728 = vpop.f32.mrb[0].mxu0
    %729 = vmatprep.mubr.bf16.mxu0 0
    %730 = vmatmul.mubr.bf16.gmra.mrb[0].mxu0 %v501
    %v731 = vpop.f32.mrb[0].mxu0
    %v732 = vadd.f32 %v162, %v731
    %v733 = vpop.f32.mrb[0].mxu0
    %v734 = vpop.f32.mrb[0].mxu0
    %v735 = vadd.f32 %v162, %v734
    %v736 = vpop.f32.mrb[0].mxu0
    %737 = vmatprep.mubr.bf16.mxu0 0
    %738 = vmatmul.mubr.bf16.gmra.mrb[0].mxu0 %v504
    %v739 = vpop.f32.mrb[0].mxu0
    %v740 = vadd.f32 %v162, %v739
    %v741 = vpop.f32.mrb[0].mxu0
    %v742 = vpop.f32.mrb[0].mxu0
    %v743 = vadd.f32 %v162, %v742
    %v744 = vpop.f32.mrb[0].mxu0
    %745 = vmatprep.mubr.bf16.mxu0 0
    %746 = vmatmul.mubr.bf16.gmra.mrb[0].mxu0 %v507
    %v747 = vpop.f32.mrb[0].mxu0
    %v748 = vadd.f32 %v162, %v747
    %v749 = vpop.f32.mrb[0].mxu0
    %v750 = vpop.f32.mrb[0].mxu0
    %v751 = vadd.f32 %v162, %v750
    %v752 = vpop.f32.mrb[0].mxu0
    %753 = vmatprep.mubr.bf16.mxu0 0
    %754 = vmatmul.mubr.bf16.gmra.mrb[0].mxu0 %v510
    %v755 = vpop.f32.mrb[0].mxu0
    %v756 = vadd.f32 %v162, %v755
    %v757 = vpop.f32.mrb[0].mxu0
    %v758 = vpop.f32.mrb[0].mxu0
    %v759 = vadd.f32 %v162, %v758
    %v760 = vpop.f32.mrb[0].mxu0
    %761 = vmatprep.mubr.bf16.mxu0 0
    %762 = vmatmul.mubr.bf16.gmra.mrb[0].mxu0 %v513
    %v763 = vpop.f32.mrb[0].mxu0
    %v764 = vadd.f32 %v162, %v763
    %v765 = vpop.f32.mrb[0].mxu0
    %v766 = vpop.f32.mrb[0].mxu0
    %v767 = vadd.f32 %v162, %v766
    %v768 = vpop.f32.mrb[0].mxu0
    %769 = vmatprep.mubr.bf16.mxu0 0
    %770 = vmatmul.mubr.bf16.gmra.mrb[0].mxu0 %v516
    %v771 = vpop.f32.mrb[0].mxu0
    %v772 = vadd.f32 %v162, %v771
    %v773 = vpop.f32.mrb[0].mxu0
    %v774 = vpop.f32.mrb[0].mxu0
    %v775 = vadd.f32 %v162, %v774
    %v776 = vpop.f32.mrb[0].mxu0
    %777 = vmatprep.mubr.bf16.mxu0 0
    %778 = vmatmul.mubr.bf16.gmra.mrb[0].mxu0 %v519
    %v779 = vpop.f32.mrb[0].mxu0
    %v780 = vadd.f32 %v162, %v779
    %v781 = vpop.f32.mrb[0].mxu0
    %v782 = vpop.f32.mrb[0].mxu0
    %v783 = vadd.f32 %v162, %v782
    %v784 = vpop.f32.mrb[0].mxu0
    %785 = vmatprep.mubr.bf16.mxu0 0
    %786 = vmatmul.mubr.bf16.gmra.mrb[0].mxu0 %v522
    %v787 = vpop.f32.mrb[0].mxu0
    %v788 = vadd.f32 %v162, %v787
    %v789 = vpop.f32.mrb[0].mxu0
    %v790 = vpop.f32.mrb[0].mxu0
    %v791 = vadd.f32 %v162, %v790
    %v792 = vpop.f32.mrb[0].mxu0
    %793 = vmatprep.mubr.bf16.mxu0 0
    %794 = vmatmul.mubr.bf16.gmra.mrb[0].mxu0 %v525
    %v795 = vpop.f32.mrb[0].mxu0
    %v796 = vadd.f32 %v162, %v795
    %v797 = vpop.f32.mrb[0].mxu0
    %v798 = vpop.f32.mrb[0].mxu0
    %v799 = vadd.f32 %v162, %v798
    %v800 = vpop.f32.mrb[0].mxu0
    %801 = vmatprep.mubr.bf16.mxu0 0
    %802 = vmatmul.mubr.bf16.gmra.mrb[0].mxu0 %v528
    %v803 = vpop.f32.mrb[0].mxu0
    %v804 = vadd.f32 %v162, %v803
    %v805 = vpop.f32.mrb[0].mxu0
    %v806 = vpop.f32.mrb[0].mxu0
    %v807 = vadd.f32 %v162, %v806
    %v808 = vpop.f32.mrb[0].mxu0
    %809 = vmatprep.mubr.bf16.mxu0 0
    %810 = vmatmul.mubr.bf16.gmra.mrb[0].mxu0 %v531
    %v811 = vpop.f32.mrb[0].mxu0
    %v812 = vadd.f32 %v162, %v811
    %v813 = vpop.f32.mrb[0].mxu0
    %v814 = vpop.f32.mrb[0].mxu0
    %v815 = vadd.f32 %v162, %v814
    %v816 = vpop.f32.mrb[0].mxu0
    %817 = vmatprep.mubr.bf16.mxu0 0
    %818 = vmatmul.mubr.bf16.gmra.mrb[0].mxu0 %v534
    %v819 = vpop.f32.mrb[0].mxu0
    %v820 = vadd.f32 %v162, %v819
    %v821 = vpop.f32.mrb[0].mxu0
    %v822 = vpop.f32.mrb[0].mxu0
    %v823 = vadd.f32 %v162, %v822
    %v824 = vpop.f32.mrb[0].mxu0
    %825 = vmatprep.mubr.bf16.mxu0 0
    %826 = vmatmul.mubr.bf16.gmra.mrb[0].mxu0 %v537
    %v827 = vpop.f32.mrb[0].mxu0
    %v828 = vadd.f32 %v162, %v827
    %v829 = vpop.f32.mrb[0].mxu0
    %v830 = vpop.f32.mrb[0].mxu0
    %v831 = vadd.f32 %v162, %v830
    %v832 = vpop.f32.mrb[0].mxu0
    %833 = vmatprep.mubr.bf16.mxu0 0
    %834 = vmatmul.mubr.bf16.gmra.mrb[0].mxu0 %v540
    %v835 = vpop.f32.mrb[0].mxu0
    %v836 = vadd.f32 %v162, %v835
    %v837 = vpop.f32.mrb[0].mxu0
    %v838 = vpop.f32.mrb[0].mxu0
    %v839 = vadd.f32 %v162, %v838
    %v840 = vpop.f32.mrb[0].mxu0
    %841 = vmatprep.mubr.bf16.mxu0 0
    %842 = vmatmul.mubr.bf16.gmra.mrb[0].mxu0 %v543
    %v843 = vpop.f32.mrb[0].mxu0
    %v844 = vadd.f32 %v162, %v843
    %v845 = vpop.f32.mrb[0].mxu0
    %v846 = vpop.f32.mrb[0].mxu0
    %v847 = vadd.f32 %v162, %v846
    %v848 = vpop.f32.mrb[0].mxu0
    %849 = vmatprep.mubr.bf16.mxu0 0
    %850 = vmatmul.mubr.bf16.gmra.mrb[0].mxu0 %v546
    %v851 = vpop.f32.mrb[0].mxu0
    %v852 = vadd.f32 %v162, %v851
    %v853 = vpop.f32.mrb[0].mxu0
    %v854 = vpop.f32.mrb[0].mxu0
    %v855 = vadd.f32 %v162, %v854
    %v856 = vpop.f32.mrb[0].mxu0
    %857 = vmatprep.mubr.bf16.mxu0 0
    %858 = vmatmul.mubr.bf16.gmra.mrb[0].mxu0 %v549
    %v859 = vpop.f32.mrb[0].mxu0
    %v860 = vadd.f32 %v162, %v859
    %v861 = vpop.f32.mrb[0].mxu0
    %v862 = vpop.f32.mrb[0].mxu0
    %v863 = vadd.f32 %v162, %v862
    %v864 = vpop.f32.mrb[0].mxu0
    %865 = vmatprep.mubr.bf16.mxu0 0
    %866 = vmatmul.mubr.bf16.gmra.mrb[0].mxu0 %v552
    %v867 = vpop.f32.mrb[0].mxu0
    %v868 = vadd.f32 %v162, %v867
    %v869 = vpop.f32.mrb[0].mxu0
    %v870 = vpop.f32.mrb[0].mxu0
    %v871 = vadd.f32 %v162, %v870
    %v872 = vpop.f32.mrb[0].mxu0
    %873 = vmatprep.mubr.bf16.mxu0 0
    %874 = vmatmul.mubr.bf16.gmra.mrb[0].mxu0 %v555
    %v875 = vpop.f32.mrb[0].mxu0
    %v876 = vadd.f32 %v162, %v875
    %v877 = vpop.f32.mrb[0].mxu0
    %v878 = vpop.f32.mrb[0].mxu0
    %v879 = vadd.f32 %v162, %v878
    %v880 = vpop.f32.mrb[0].mxu0
    %881 = vmatprep.mubr.bf16.mxu0 0
    %882 = vmatmul.mubr.bf16.gmra.mrb[0].mxu0 %v558
    %v883 = vpop.f32.mrb[0].mxu0
    %v884 = vadd.f32 %v162, %v883
    %v885 = vpop.f32.mrb[0].mxu0
    %v886 = vpop.f32.mrb[0].mxu0
    %v887 = vadd.f32 %v162, %v886
    %v888 = vpop.f32.mrb[0].mxu0
    %889 = vmatprep.mubr.bf16.mxu0 0
    %890 = vmatmul.mubr.bf16.gmra.mrb[0].mxu0 %v561
    %v891 = vpop.f32.mrb[0].mxu0
    %v892 = vadd.f32 %v162, %v891
    %v893 = vpop.f32.mrb[0].mxu0
    %v894 = vpop.f32.mrb[0].mxu0
    %v895 = vadd.f32 %v162, %v894
    %v896 = vpop.f32.mrb[0].mxu0
    %897 = vmatprep.mubr.bf16.mxu0 0
    %898 = vmatmul.mubr.bf16.gmra.mrb[0].mxu0 %v564
    %v899 = vpop.f32.mrb[0].mxu0
    %v900 = vadd.f32 %v162, %v899
    %v901 = vpop.f32.mrb[0].mxu0
    %v902 = vpop.f32.mrb[0].mxu0
    %v903 = vadd.f32 %v162, %v902
    %v904 = vpop.f32.mrb[0].mxu0
    %905 = vmatprep.mubr.bf16.mxu0 0
    %906 = vmatmul.mubr.bf16.gmra.mrb[0].mxu0 %v567
    %v907 = vpop.f32.mrb[0].mxu0
    %v908 = vadd.f32 %v162, %v907
    %v909 = vpop.f32.mrb[0].mxu0
    %v910 = vpop.f32.mrb[0].mxu0
    %v911 = vadd.f32 %v162, %v910
    %v912 = vpop.f32.mrb[0].mxu0
    %913 = vmatprep.mubr.bf16.mxu0 0
    %914 = vmatmul.mubr.bf16.gmra.mrb[0].mxu0 %v570
    %v915 = vpop.f32.mrb[0].mxu0
    %v916 = vadd.f32 %v162, %v915
    %v917 = vpop.f32.mrb[0].mxu0
    %v918 = vpop.f32.mrb[0].mxu0
    %v919 = vadd.f32 %v162, %v918
    %v920 = vpop.f32.mrb[0].mxu0
    %921 = vmatprep.mubr.bf16.mxu0 0
    %922 = vmatmul.mubr.bf16.gmra.mrb[0].mxu0 %v573
    %v923 = vpop.f32.mrb[0].mxu0
    %v924 = vadd.f32 %v162, %v923
    %v925 = vpop.f32.mrb[0].mxu0
    %v926 = vpop.f32.mrb[0].mxu0
    %v927 = vadd.f32 %v162, %v926
    %v928 = vpop.f32.mrb[0].mxu0
    %929 = vmatprep.mubr.bf16.mxu0 0
    %930 = vmatmul.mubr.bf16.gmra.mrb[0].mxu0 %v576
    %v931 = vpop.f32.mrb[0].mxu0
    %v932 = vadd.f32 %v162, %v931
    %v933 = vpop.f32.mrb[0].mxu0
    %v934 = vpop.f32.mrb[0].mxu0
    %v935 = vadd.f32 %v162, %v934
    %v936 = vpop.f32.mrb[0].mxu0
    %937 = vmatprep.mubr.bf16.mxu0 0
    %938 = vmatmul.mubr.bf16.gmra.mrb[0].mxu0 %v579
    %v939 = vpop.f32.mrb[0].mxu0
    %v940 = vadd.f32 %v162, %v939
    %v941 = vpop.f32.mrb[0].mxu0
    %v942 = vpop.f32.mrb[0].mxu0
    %v943 = vadd.f32 %v162, %v942
    %v944 = vpop.f32.mrb[0].mxu0
    %945 = vmatprep.mubr.bf16.mxu0 0
    %946 = vmatmul.mubr.bf16.gmra.mrb[0].mxu0 %v582
    %v947 = vpop.f32.mrb[0].mxu0
    %v948 = vadd.f32 %v162, %v947
    %v949 = vpop.f32.mrb[0].mxu0
    %v950 = vpop.f32.mrb[0].mxu0
    %v951 = vadd.f32 %v162, %v950
    %v952 = vpop.f32.mrb[0].mxu0
    %953 = vmatprep.mubr.bf16.mxu0 0
    %954 = vmatmul.mubr.bf16.gmra.mrb[0].mxu0 %v585
    %v955 = vpop.f32.mrb[0].mxu0
    %v956 = vadd.f32 %v162, %v955
    %v957 = vpop.f32.mrb[0].mxu0
    %v958 = vpop.f32.mrb[0].mxu0
    %v959 = vadd.f32 %v162, %v958
    %v960 = vpop.f32.mrb[0].mxu0
    %961 = vmatprep.mubr.bf16.mxu0 0
    %962 = vmatmul.mubr.bf16.gmra.mrb[0].mxu0 %v588
    %v963 = vpop.f32.mrb[0].mxu0
    %v964 = vadd.f32 %v162, %v963
    %v965 = vpop.f32.mrb[0].mxu0
    %v966 = vpop.f32.mrb[0].mxu0
    %v967 = vadd.f32 %v162, %v966
    %v968 = vpop.f32.mrb[0].mxu0
    %969 = vmatprep.mubr.bf16.mxu0 0
    %970 = vmatmul.mubr.bf16.gmra.mrb[0].mxu0 %v591
    %v971 = vpop.f32.mrb[0].mxu0
    %v972 = vadd.f32 %v162, %v971
    %v973 = vpop.f32.mrb[0].mxu0
    %v974 = vpop.f32.mrb[0].mxu0
    %v975 = vadd.f32 %v162, %v974
    %v976 = vpop.f32.mrb[0].mxu0
    %977 = vmatprep.mubr.bf16.mxu0 0
    %978 = vmatmul.mubr.bf16.gmra.mrb[0].mxu0 %v594
    %v979 = vpop.f32.mrb[0].mxu0
    %v980 = vadd.f32 %v162, %v979
    %v981 = vpop.f32.mrb[0].mxu0
    %v982 = vpop.f32.mrb[0].mxu0
    %v983 = vadd.f32 %v162, %v982
    %v984 = vpop.f32.mrb[0].mxu0
    %985 = vmatprep.mubr.bf16.mxu0 0
    %986 = vmatmul.mubr.bf16.gmra.mrb[0].mxu0 %v597
    %v987 = vpop.f32.mrb[0].mxu0
    %v988 = vadd.f32 %v162, %v987
    %v989 = vpop.f32.mrb[0].mxu0
    %v990 = vpop.f32.mrb[0].mxu0
    %v991 = vadd.f32 %v162, %v990
    %v992 = vpop.f32.mrb[0].mxu0
    %993 = vmatprep.mubr.bf16.mxu0 0
    %994 = vmatmul.mubr.bf16.gmra.mrb[0].mxu0 %v600
    %v995 = vpop.f32.mrb[0].mxu0
    %v996 = vadd.f32 %v162, %v995
    %v997 = vpop.f32.mrb[0].mxu0
    %v998 = vpop.f32.mrb[0].mxu0
    %v999 = vadd.f32 %v162, %v998
    %v1000 = vpop.f32.mrb[0].mxu0
    %1001 = vmatprep.mubr.bf16.mxu0 0
    %1002 = vmatmul.mubr.bf16.gmra.mrb[0].mxu0 %v603
    %v1003 = vpop.f32.mrb[0].mxu0
    %v1004 = vadd.f32 %v162, %v1003
    %v1005 = vpop.f32.mrb[0].mxu0
    %v1006 = vpop.f32.mrb[0].mxu0
    %v1007 = vadd.f32 %v162, %v1006
    %v1008 = vpop.f32.mrb[0].mxu0
    %1009 = vmatprep.mubr.bf16.mxu0 0
    %1010 = vmatmul.mubr.bf16.gmra.mrb[0].mxu0 %v606
    %v1011 = vpop.f32.mrb[0].mxu0
    %v1012 = vadd.f32 %v162, %v1011
    %v1013 = vpop.f32.mrb[0].mxu0
    %v1014 = vpop.f32.mrb[0].mxu0
    %v1015 = vadd.f32 %v162, %v1014
    %v1016 = vpop.f32.mrb[0].mxu0
    %1017 = vmatprep.mubr.bf16.mxu0 0
    %1018 = vmatmul.mubr.bf16.gmra.mrb[0].mxu0 %v609
    %v1019 = vpop.f32.mrb[0].mxu0
    %v1020 = vadd.f32 %v162, %v1019
    %v1021 = vpop.f32.mrb[0].mxu0
    %v1022 = vpop.f32.mrb[0].mxu0
    %v1023 = vadd.f32 %v162, %v1022
    %v1024 = vpop.f32.mrb[0].mxu0
    %1025 = vmatprep.mubr.bf16.mxu0 0
    %1026 = vmatmul.mubr.bf16.gmra.mrb[0].mxu0 %v612
    %v1027 = vpop.f32.mrb[0].mxu0
    %v1028 = vadd.f32 %v162, %v1027
    %v1029 = vpop.f32.mrb[0].mxu0
    %v1030 = vpop.f32.mrb[0].mxu0
    %v1031 = vadd.f32 %v162, %v1030
    %v1032 = vpop.f32.mrb[0].mxu0
    %1033 = vmatprep.mubr.bf16.mxu0 0
    %1034 = vmatmul.mubr.bf16.gmra.mrb[0].mxu0 %v615
    %v1035 = vpop.f32.mrb[0].mxu0
    %v1036 = vadd.f32 %v162, %v1035
    %v1037 = vpop.f32.mrb[0].mxu0
    %v1038 = vpop.f32.mrb[0].mxu0
    %v1039 = vadd.f32 %v162, %v1038
    %v1040 = vpop.f32.mrb[0].mxu0
    %1041 = vmatprep.mubr.bf16.mxu0 0
    %1042 = vmatmul.mubr.bf16.gmra.mrb[0].mxu0 %v618
    %v1043 = vpop.f32.mrb[0].mxu0
    %v1044 = vadd.f32 %v162, %v1043
    %v1045 = vpop.f32.mrb[0].mxu0
    %v1046 = vpop.f32.mrb[0].mxu0
    %v1047 = vadd.f32 %v162, %v1046
    %v1048 = vpop.f32.mrb[0].mxu0
    %1049 = vmatprep.mubr.bf16.mxu0 0
    %1050 = vmatmul.mubr.bf16.gmra.mrb[0].mxu0 %v621
    %v1051 = vpop.f32.mrb[0].mxu0
    %v1052 = vadd.f32 %v162, %v1051
    %v1053 = vpop.f32.mrb[0].mxu0
    %v1054 = vpop.f32.mrb[0].mxu0
    %v1055 = vadd.f32 %v162, %v1054
    %v1056 = vpop.f32.mrb[0].mxu0
    %1057 = vmatprep.mubr.bf16.mxu0 0
    %1058 = vmatmul.mubr.bf16.gmra.mrb[0].mxu0 %v624
    %v1059 = vpop.f32.mrb[0].mxu0
    %v1060 = vadd.f32 %v162, %v1059
    %v1061 = vpop.f32.mrb[0].mxu0
    %v1062 = vpop.f32.mrb[0].mxu0
    %v1063 = vadd.f32 %v162, %v1062
    %v1064 = vpop.f32.mrb[0].mxu0
    %1065 = vmatprep.mubr.bf16.mxu0 0
    %1066 = vmatmul.mubr.bf16.gmra.mrb[0].mxu0 %v627
    %v1067 = vpop.f32.mrb[0].mxu0
    %v1068 = vadd.f32 %v162, %v1067
    %v1069 = vpop.f32.mrb[0].mxu0
    %v1070 = vpop.f32.mrb[0].mxu0
    %v1071 = vadd.f32 %v162, %v1070
    %v1072 = vpop.f32.mrb[0].mxu0
    %1073 = vmatprep.mubr.bf16.mxu0 0
    %1074 = vmatmul.mubr.bf16.gmra.mrb[0].mxu0 %v630
    %v1075 = vpop.f32.mrb[0].mxu0
    %v1076 = vadd.f32 %v162, %v1075
    %v1077 = vpop.f32.mrb[0].mxu0
    %v1078 = vpop.f32.mrb[0].mxu0
    %v1079 = vadd.f32 %v162, %v1078
    %v1080 = vpop.f32.mrb[0].mxu0
    %1081 = vmatprep.mubr.bf16.mxu0 0
    %1082 = vmatmul.mubr.bf16.gmra.mrb[0].mxu0 %v633
    %v1083 = vpop.f32.mrb[0].mxu0
    %v1084 = vadd.f32 %v162, %v1083
    %v1085 = vpop.f32.mrb[0].mxu0
    %v1086 = vpop.f32.mrb[0].mxu0
    %v1087 = vadd.f32 %v162, %v1086
    %v1088 = vpop.f32.mrb[0].mxu0
    %1089 = vmatprep.mubr.bf16.mxu0 0
    %1090 = vmatmul.mubr.bf16.gmra.mrb[0].mxu0 %v636
    %v1091 = vpop.f32.mrb[0].mxu0
    %v1092 = vadd.f32 %v162, %v1091
    %v1093 = vpop.f32.mrb[0].mxu0
    %v1094 = vpop.f32.mrb[0].mxu0
    %v1095 = vadd.f32 %v162, %v1094
    %v1096 = vpop.f32.mrb[0].mxu0
    %1097 = vmatprep.mubr.bf16.mxu0 0
    %1098 = vmatmul.mubr.bf16.gmra.mrb[0].mxu0 %v639
    %v1099 = vpop.f32.mrb[0].mxu0
    %v1100 = vadd.f32 %v162, %v1099
    %v1101 = vpop.f32.mrb[0].mxu0
    %v1102 = vpop.f32.mrb[0].mxu0
    %v1103 = vadd.f32 %v162, %v1102
    %v1104 = vpop.f32.mrb[0].mxu0
    %1105 = vmatprep.mubr.bf16.mxu0 0
    %1106 = vmatmul.mubr.bf16.gmra.mrb[0].mxu0 %v642
    %v1107 = vpop.f32.mrb[0].mxu0
    %v1108 = vadd.f32 %v162, %v1107
    %v1109 = vpop.f32.mrb[0].mxu0
    %v1110 = vpop.f32.mrb[0].mxu0
    %v1111 = vadd.f32 %v162, %v1110
    %v1112 = vpop.f32.mrb[0].mxu0
    %1113 = vmatprep.mubr.bf16.mxu0 0
    %1114 = vmatmul.mubr.bf16.gmra.mrb[0].mxu0 %v645
    %v1115 = vpop.f32.mrb[0].mxu0
    %v1116 = vadd.f32 %v162, %v1115
    %v1117 = vpop.f32.mrb[0].mxu0
    %v1118 = vpop.f32.mrb[0].mxu0
    %v1119 = vadd.f32 %v162, %v1118
    %v1120 = vpop.f32.mrb[0].mxu0
    %1121 = vmatprep.mubr.bf16.mxu0 0
    %1122 = vmatmul.mubr.bf16.gmra.mrb[0].mxu0 %v648
    %v1123 = vpop.f32.mrb[0].mxu0
    %v1124 = vadd.f32 %v162, %v1123
    %v1125 = vpop.f32.mrb[0].mxu0
    %v1126 = vpop.f32.mrb[0].mxu0
    %v1127 = vadd.f32 %v162, %v1126
    %v1128 = vpop.f32.mrb[0].mxu0
    %1129 = vmatprep.mubr.bf16.mxu0 0
    %1130 = vmatmul.mubr.bf16.gmra.mrb[0].mxu0 %v651
    %v1131 = vpop.f32.mrb[0].mxu0
    %v1132 = vadd.f32 %v162, %v1131
    %v1133 = vpop.f32.mrb[0].mxu0
    %v1134 = vpop.f32.mrb[0].mxu0
    %v1135 = vadd.f32 %v162, %v1134
    %v1136 = vpop.f32.mrb[0].mxu0
    %1137 = vmatprep.mubr.bf16.mxu0 0
    %1138 = vmatmul.mubr.bf16.gmra.mrb[0].mxu0 %v654
    %v1139 = vpop.f32.mrb[0].mxu0
    %v1140 = vadd.f32 %v162, %v1139
    %v1141 = vpop.f32.mrb[0].mxu0
    %v1142 = vpop.f32.mrb[0].mxu0
    %v1143 = vadd.f32 %v162, %v1142
    %v1144 = vpop.f32.mrb[0].mxu0
    %1145 = vmatprep.mubr.bf16.mxu0 0
    %1146 = vmatmul.mubr.bf16.gmra.mrb[0].mxu0 %v657
    %v1147 = vpop.f32.mrb[0].mxu0
    %v1148 = vadd.f32 %v162, %v1147
    %v1149 = vpop.f32.mrb[0].mxu0
    %v1150 = vpop.f32.mrb[0].mxu0
    %v1151 = vadd.f32 %v162, %v1150
    %v1152 = vpop.f32.mrb[0].mxu0
    %1153 = vmatprep.mubr.bf16.mxu0 0
    %1154 = vmatmul.mubr.bf16.gmra.mrb[0].mxu0 %v660
    %v1155 = vpop.f32.mrb[0].mxu0
    %v1156 = vadd.f32 %v162, %v1155
    %v1157 = vpop.f32.mrb[0].mxu0
    %v1158 = vpop.f32.mrb[0].mxu0
    %v1159 = vadd.f32 %v162, %v1158
    %v1160 = vpop.f32.mrb[0].mxu0
    %1161 = vmatprep.mubr.bf16.mxu0 0
    %1162 = vmatmul.mubr.bf16.gmra.mrb[0].mxu0 %v663
    %v1163 = vpop.f32.mrb[0].mxu0
    %v1164 = vadd.f32 %v162, %v1163
    %v1165 = vpop.f32.mrb[0].mxu0
    %v1166 = vpop.f32.mrb[0].mxu0
    %v1167 = vadd.f32 %v162, %v1166
    %v1168 = vpop.f32.mrb[0].mxu0
    %1169 = vmatprep.mubr.bf16.mxu0 0
    %1170 = vmatmul.mubr.bf16.gmra.mrb[0].mxu0 %v666
    %v1171 = vpop.f32.mrb[0].mxu0
    %v1172 = vadd.f32 %v162, %v1171
    %v1173 = vpop.f32.mrb[0].mxu0
    %v1174 = vpop.f32.mrb[0].mxu0
    %v1175 = vadd.f32 %v162, %v1174
    %v1176 = vpop.f32.mrb[0].mxu0
    %1177 = vmatprep.mubr.bf16.mxu0 0
    %1178 = vmatmul.mubr.bf16.gmra.mrb[0].mxu0 %v669
    %v1179 = vpop.f32.mrb[0].mxu0
    %v1180 = vadd.f32 %v162, %v1179
    %v1181 = vpop.f32.mrb[0].mxu0
    %v1182 = vpop.f32.mrb[0].mxu0
    %v1183 = vadd.f32 %v162, %v1182
    %v1184 = vpop.f32.mrb[0].mxu0
    %1185 = vmatprep.mubr.bf16.mxu0 0
    %1186 = vmatmul.mubr.bf16.gmra.mrb[0].mxu0 %v672
    %v1187 = vpop.f32.mrb[0].mxu0
    %v1188 = vadd.f32 %v162, %v1187
    %v1189 = vpop.f32.mrb[0].mxu0
    %v1190 = vpop.f32.mrb[0].mxu0
    %v1191 = vadd.f32 %v162, %v1190
    %v1192 = vpop.f32.mrb[0].mxu0
    %1193 = vmatprep.mubr.bf16.mxu0 0
    %1194 = vmatmul.mubr.bf16.gmra.mrb[0].mxu0 %v675
    %v1195 = vpop.f32.mrb[0].mxu0
    %v1196 = vadd.f32 %v162, %v1195
    %v1197 = vpop.f32.mrb[0].mxu0
    %v1198 = vpop.f32.mrb[0].mxu0
    %v1199 = vadd.f32 %v162, %v1198
    %v1200 = vpop.f32.mrb[0].mxu0
    %1201 = vmatprep.mubr.bf16.mxu0 0
    %1202 = vmatmul.mubr.bf16.gmra.mrb[0].mxu0 %v678
    %v1203 = vpop.f32.mrb[0].mxu0
    %v1204 = vadd.f32 %v162, %v1203
    %v1205 = vpop.f32.mrb[0].mxu0
    %v1206 = vpop.f32.mrb[0].mxu0
    %v1207 = vadd.f32 %v162, %v1206
    %v1208 = vpop.f32.mrb[0].mxu0
    %1209 = vmatprep.mubr.bf16.mxu0 0
    %1210 = vmatmul.mubr.bf16.gmra.mrb[0].mxu0 %v681
    %v1211 = vpop.f32.mrb[0].mxu0
    %v1212 = vadd.f32 %v162, %v1211
    %v1213 = vpop.f32.mrb[0].mxu0
    %v1214 = vpop.f32.mrb[0].mxu0
    %v1215 = vadd.f32 %v162, %v1214
    %v1216 = vpop.f32.mrb[0].mxu0
    %1217 = vmatprep.mubr.bf16.mxu0 0
    %1218 = vmatmul.mubr.bf16.gmra.mrb[0].mxu0 %v684
    %v1219 = vpop.f32.mrb[0].mxu0
    %v1220 = vadd.f32 %v162, %v1219
    %v1221 = vpop.f32.mrb[0].mxu0
    %v1222 = vpop.f32.mrb[0].mxu0
    %v1223 = vadd.f32 %v162, %v1222
    %v1224 = vpop.f32.mrb[0].mxu0
    %1225 = vmatprep.mubr.bf16.mxu0 0
    %1226 = vmatmul.mubr.bf16.gmra.mrb[0].mxu0 %v687
    %v1227 = vpop.f32.mrb[0].mxu0
    %v1228 = vadd.f32 %v162, %v1227
    %v1229 = vpop.f32.mrb[0].mxu0
    %v1230 = vpop.f32.mrb[0].mxu0
    %v1231 = vadd.f32 %v162, %v1230
    %v1232 = vpop.f32.mrb[0].mxu0
    %1233 = vdwg.mxu0
    %v1234 = vmax.f32 %v724, 0.0
    %v1235 = vmax.f32 %v727, 0.0
    %v1236 = vmax.f32 %v732, 0.0
    %v1237 = vmax.f32 %v735, 0.0
    %v1238 = vmax.f32 %v740, 0.0
    %v1239 = vmax.f32 %v743, 0.0
    %v1240 = vmax.f32 %v748, 0.0
    %v1241 = vmax.f32 %v751, 0.0
    %v1242 = vmax.f32 %v756, 0.0
    %v1243 = vmax.f32 %v759, 0.0
    %v1244 = vmax.f32 %v764, 0.0
    %v1245 = vmax.f32 %v767, 0.0
    %v1246 = vmax.f32 %v772, 0.0
    %v1247 = vmax.f32 %v775, 0.0
    %v1248 = vmax.f32 %v780, 0.0
    %v1249 = vmax.f32 %v783, 0.0
    %v1250 = vmax.f32 %v788, 0.0
    %v1251 = vmax.f32 %v791, 0.0
    %v1252 = vmax.f32 %v796, 0.0
    %v1253 = vmax.f32 %v799, 0.0
    %v1254 = vmax.f32 %v804, 0.0
    %v1255 = vmax.f32 %v807, 0.0
    %v1256 = vmax.f32 %v812, 0.0
    %v1257 = vmax.f32 %v815, 0.0
    %v1258 = vmax.f32 %v820, 0.0
    %v1259 = vmax.f32 %v823, 0.0
    %v1260 = vmax.f32 %v828, 0.0
    %v1261 = vmax.f32 %v831, 0.0
    %v1262 = vmax.f32 %v836, 0.0
    %v1263 = vmax.f32 %v839, 0.0
    %v1264 = vmax.f32 %v844, 0.0
    %v1265 = vmax.f32 %v847, 0.0
    %v1266 = vmax.f32 %v852, 0.0
    %v1267 = vmax.f32 %v855, 0.0
    %v1268 = vmax.f32 %v860, 0.0
    %v1269 = vmax.f32 %v863, 0.0
    %v1270 = vmax.f32 %v868, 0.0
    %v1271 = vmax.f32 %v871, 0.0
    %v1272 = vmax.f32 %v876, 0.0
    %v1273 = vmax.f32 %v879, 0.0
    %v1274 = vmax.f32 %v884, 0.0
    %v1275 = vmax.f32 %v887, 0.0
    %v1276 = vmax.f32 %v892, 0.0
    %v1277 = vmax.f32 %v895, 0.0
    %v1278 = vmax.f32 %v900, 0.0
    %v1279 = vmax.f32 %v903, 0.0
    %v1280 = vmax.f32 %v908, 0.0
    %v1281 = vmax.f32 %v911, 0.0
    %v1282 = vmax.f32 %v916, 0.0
    %v1283 = vmax.f32 %v919, 0.0
    %v1284 = vmax.f32 %v924, 0.0
    %v1285 = vmax.f32 %v927, 0.0
    %v1286 = vmax.f32 %v932, 0.0
    %v1287 = vmax.f32 %v935, 0.0
    %v1288 = vmax.f32 %v940, 0.0
    %v1289 = vmax.f32 %v943, 0.0
    %v1290 = vmax.f32 %v948, 0.0
    %v1291 = vmax.f32 %v951, 0.0
    %v1292 = vmax.f32 %v956, 0.0
    %v1293 = vmax.f32 %v959, 0.0
    %v1294 = vmax.f32 %v964, 0.0
    %v1295 = vmax.f32 %v967, 0.0
    %v1296 = vmax.f32 %v972, 0.0
    %v1297 = vmax.f32 %v975, 0.0
    %v1298 = vmax.f32 %v980, 0.0
    %v1299 = vmax.f32 %v983, 0.0
    %v1300 = vmax.f32 %v988, 0.0
    %v1301 = vmax.f32 %v991, 0.0
    %v1302 = vmax.f32 %v996, 0.0
    %v1303 = vmax.f32 %v999, 0.0
    %v1304 = vmax.f32 %v1004, 0.0
    %v1305 = vmax.f32 %v1007, 0.0
    %v1306 = vmax.f32 %v1012, 0.0
    %v1307 = vmax.f32 %v1015, 0.0
    %v1308 = vmax.f32 %v1020, 0.0
    %v1309 = vmax.f32 %v1023, 0.0
    %v1310 = vmax.f32 %v1028, 0.0
    %v1311 = vmax.f32 %v1031, 0.0
    %v1312 = vmax.f32 %v1036, 0.0
    %v1313 = vmax.f32 %v1039, 0.0
    %v1314 = vmax.f32 %v1044, 0.0
    %v1315 = vmax.f32 %v1047, 0.0
    %v1316 = vmax.f32 %v1052, 0.0
    %v1317 = vmax.f32 %v1055, 0.0
    %v1318 = vmax.f32 %v1060, 0.0
    %v1319 = vmax.f32 %v1063, 0.0
    %v1320 = vmax.f32 %v1068, 0.0
    %v1321 = vmax.f32 %v1071, 0.0
    %v1322 = vmax.f32 %v1076, 0.0
    %v1323 = vmax.f32 %v1079, 0.0
    %v1324 = vmax.f32 %v1084, 0.0
    %v1325 = vmax.f32 %v1087, 0.0
    %v1326 = vmax.f32 %v1092, 0.0
    %v1327 = vmax.f32 %v1095, 0.0
    %v1328 = vmax.f32 %v1100, 0.0
    %v1329 = vmax.f32 %v1103, 0.0
    %v1330 = vmax.f32 %v1108, 0.0
    %v1331 = vmax.f32 %v1111, 0.0
    %v1332 = vmax.f32 %v1116, 0.0
    %v1333 = vmax.f32 %v1119, 0.0
    %v1334 = vmax.f32 %v1124, 0.0
    %v1335 = vmax.f32 %v1127, 0.0
    %v1336 = vmax.f32 %v1132, 0.0
    %v1337 = vmax.f32 %v1135, 0.0
    %v1338 = vmax.f32 %v1140, 0.0
    %v1339 = vmax.f32 %v1143, 0.0
    %v1340 = vmax.f32 %v1148, 0.0
    %v1341 = vmax.f32 %v1151, 0.0
    %v1342 = vmax.f32 %v1156, 0.0
    %v1343 = vmax.f32 %v1159, 0.0
    %v1344 = vmax.f32 %v1164, 0.0
    %v1345 = vmax.f32 %v1167, 0.0
    %v1346 = vmax.f32 %v1172, 0.0
    %v1347 = vmax.f32 %v1175, 0.0
    %v1348 = vmax.f32 %v1180, 0.0
    %v1349 = vmax.f32 %v1183, 0.0
    %v1350 = vmax.f32 %v1188, 0.0
    %v1351 = vmax.f32 %v1191, 0.0
    %v1352 = vmax.f32 %v1196, 0.0
    %v1353 = vmax.f32 %v1199, 0.0
    %v1354 = vmax.f32 %v1204, 0.0
    %v1355 = vmax.f32 %v1207, 0.0
    %v1356 = vmax.f32 %v1212, 0.0
    %v1357 = vmax.f32 %v1215, 0.0
    %v1358 = vmax.f32 %v1220, 0.0
    %v1359 = vmax.f32 %v1223, 0.0
    %v1360 = vmax.f32 %v1228, 0.0
    %v1361 = vmax.f32 %v1231, 0.0
    %v1362 = vadd.f32 %v1234, %v1235
    %v1363 = vadd.f32 %v1362, %v1236
    %v1364 = vadd.f32 %v1363, %v1237
    %v1365 = vadd.f32 %v1364, %v1238
    %v1366 = vadd.f32 %v1365, %v1239
    %v1367 = vadd.f32 %v1366, %v1240
    %v1368 = vadd.f32 %v1367, %v1241
    %v1369 = vadd.f32 %v1368, %v1242
    %v1370 = vadd.f32 %v1369, %v1243
    %v1371 = vadd.f32 %v1370, %v1244
    %v1372 = vadd.f32 %v1371, %v1245
    %v1373 = vadd.f32 %v1372, %v1246
    %v1374 = vadd.f32 %v1373, %v1247
    %v1375 = vadd.f32 %v1374, %v1248
    %v1376 = vadd.f32 %v1375, %v1249
    %v1377 = vrot.slane %v1376, 4
    %v1378 = vadd.f32 %v1376, %v1377
    %v1379 = vrot.slane %v1378, 2
    %v1380 = vadd.f32 %v1378, %v1379
    %v1381 = vrot.slane %v1380, 1
    %v1382 = vadd.f32 %v1380, %v1381
    %v1383 = vadd.f32 %v1250, %v1251
    %v1384 = vadd.f32 %v1383, %v1252
    %v1385 = vadd.f32 %v1384, %v1253
    %v1386 = vadd.f32 %v1385, %v1254
    %v1387 = vadd.f32 %v1386, %v1255
    %v1388 = vadd.f32 %v1387, %v1256
    %v1389 = vadd.f32 %v1388, %v1257
    %v1390 = vadd.f32 %v1389, %v1258
    %v1391 = vadd.f32 %v1390, %v1259
    %v1392 = vadd.f32 %v1391, %v1260
    %v1393 = vadd.f32 %v1392, %v1261
    %v1394 = vadd.f32 %v1393, %v1262
    %v1395 = vadd.f32 %v1394, %v1263
    %v1396 = vadd.f32 %v1395, %v1264
    %v1397 = vadd.f32 %v1396, %v1265
    %v1398 = vrot.slane %v1397, 4
    %v1399 = vadd.f32 %v1397, %v1398
    %v1400 = vrot.slane %v1399, 2
    %v1401 = vadd.f32 %v1399, %v1400
    %v1402 = vrot.slane %v1401, 1
    %v1403 = vadd.f32 %v1401, %v1402
    %v1404 = vadd.f32 %v1266, %v1267
    %v1405 = vadd.f32 %v1404, %v1268
    %v1406 = vadd.f32 %v1405, %v1269
    %v1407 = vadd.f32 %v1406, %v1270
    %v1408 = vadd.f32 %v1407, %v1271
    %v1409 = vadd.f32 %v1408, %v1272
    %v1410 = vadd.f32 %v1409, %v1273
    %v1411 = vadd.f32 %v1410, %v1274
    %v1412 = vadd.f32 %v1411, %v1275
    %v1413 = vadd.f32 %v1412, %v1276
    %v1414 = vadd.f32 %v1413, %v1277
    %v1415 = vadd.f32 %v1414, %v1278
    %v1416 = vadd.f32 %v1415, %v1279
    %v1417 = vadd.f32 %v1416, %v1280
    %v1418 = vadd.f32 %v1417, %v1281
    %v1419 = vrot.slane %v1418, 4
    %v1420 = vadd.f32 %v1418, %v1419
    %v1421 = vrot.slane %v1420, 2
    %v1422 = vadd.f32 %v1420, %v1421
    %v1423 = vrot.slane %v1422, 1
    %v1424 = vadd.f32 %v1422, %v1423
    %v1425 = vadd.f32 %v1282, %v1283
    %v1426 = vadd.f32 %v1425, %v1284
    %v1427 = vadd.f32 %v1426, %v1285
    %v1428 = vadd.f32 %v1427, %v1286
    %v1429 = vadd.f32 %v1428, %v1287
    %v1430 = vadd.f32 %v1429, %v1288
    %v1431 = vadd.f32 %v1430, %v1289
    %v1432 = vadd.f32 %v1431, %v1290
    %v1433 = vadd.f32 %v1432, %v1291
    %v1434 = vadd.f32 %v1433, %v1292
    %v1435 = vadd.f32 %v1434, %v1293
    %v1436 = vadd.f32 %v1435, %v1294
    %v1437 = vadd.f32 %v1436, %v1295
    %v1438 = vadd.f32 %v1437, %v1296
    %v1439 = vadd.f32 %v1438, %v1297
    %v1440 = vrot.slane %v1439, 4
    %v1441 = vadd.f32 %v1439, %v1440
    %v1442 = vrot.slane %v1441, 2
    %v1443 = vadd.f32 %v1441, %v1442
    %v1444 = vrot.slane %v1443, 1
    %v1445 = vadd.f32 %v1443, %v1444
    %v1446 = vadd.f32 %v1298, %v1299
    %v1447 = vadd.f32 %v1446, %v1300
    %v1448 = vadd.f32 %v1447, %v1301
    %v1449 = vadd.f32 %v1448, %v1302
    %v1450 = vadd.f32 %v1449, %v1303
    %v1451 = vadd.f32 %v1450, %v1304
    %v1452 = vadd.f32 %v1451, %v1305
    %v1453 = vadd.f32 %v1452, %v1306
    %v1454 = vadd.f32 %v1453, %v1307
    %v1455 = vadd.f32 %v1454, %v1308
    %v1456 = vadd.f32 %v1455, %v1309
    %v1457 = vadd.f32 %v1456, %v1310
    %v1458 = vadd.f32 %v1457, %v1311
    %v1459 = vadd.f32 %v1458, %v1312
    %v1460 = vadd.f32 %v1459, %v1313
    %v1461 = vrot.slane %v1460, 4
    %v1462 = vadd.f32 %v1460, %v1461
    %v1463 = vrot.slane %v1462, 2
    %v1464 = vadd.f32 %v1462, %v1463
    %v1465 = vrot.slane %v1464, 1
    %v1466 = vadd.f32 %v1464, %v1465
    %v1467 = vadd.f32 %v1314, %v1315
    %v1468 = vadd.f32 %v1467, %v1316
    %v1469 = vadd.f32 %v1468, %v1317
    %v1470 = vadd.f32 %v1469, %v1318
    %v1471 = vadd.f32 %v1470, %v1319
    %v1472 = vadd.f32 %v1471, %v1320
    %v1473 = vadd.f32 %v1472, %v1321
    %v1474 = vadd.f32 %v1473, %v1322
    %v1475 = vadd.f32 %v1474, %v1323
    %v1476 = vadd.f32 %v1475, %v1324
    %v1477 = vadd.f32 %v1476, %v1325
    %v1478 = vadd.f32 %v1477, %v1326
    %v1479 = vadd.f32 %v1478, %v1327
    %v1480 = vadd.f32 %v1479, %v1328
    %v1481 = vadd.f32 %v1480, %v1329
    %v1482 = vrot.slane %v1481, 4
    %v1483 = vadd.f32 %v1481, %v1482
    %v1484 = vrot.slane %v1483, 2
    %v1485 = vadd.f32 %v1483, %v1484
    %v1486 = vrot.slane %v1485, 1
    %v1487 = vadd.f32 %v1485, %v1486
    %v1488 = vadd.f32 %v1330, %v1331
    %v1489 = vadd.f32 %v1488, %v1332
    %v1490 = vadd.f32 %v1489, %v1333
    %v1491 = vadd.f32 %v1490, %v1334
    %v1492 = vadd.f32 %v1491, %v1335
    %v1493 = vadd.f32 %v1492, %v1336
    %v1494 = vadd.f32 %v1493, %v1337
    %v1495 = vadd.f32 %v1494, %v1338
    %v1496 = vadd.f32 %v1495, %v1339
    %v1497 = vadd.f32 %v1496, %v1340
    %v1498 = vadd.f32 %v1497, %v1341
    %v1499 = vadd.f32 %v1498, %v1342
    %v1500 = vadd.f32 %v1499, %v1343
    %v1501 = vadd.f32 %v1500, %v1344
    %v1502 = vadd.f32 %v1501, %v1345
    %v1503 = vrot.slane %v1502, 4
    %v1504 = vadd.f32 %v1502, %v1503
    %v1505 = vrot.slane %v1504, 2
    %v1506 = vadd.f32 %v1504, %v1505
    %v1507 = vrot.slane %v1506, 1
    %v1508 = vadd.f32 %v1506, %v1507
    %v1509 = vadd.f32 %v1346, %v1347
    %v1510 = vadd.f32 %v1509, %v1348
    %v1511 = vadd.f32 %v1510, %v1349
    %v1512 = vadd.f32 %v1511, %v1350
    %v1513 = vadd.f32 %v1512, %v1351
    %v1514 = vadd.f32 %v1513, %v1352
    %v1515 = vadd.f32 %v1514, %v1353
    %v1516 = vadd.f32 %v1515, %v1354
    %v1517 = vadd.f32 %v1516, %v1355
    %v1518 = vadd.f32 %v1517, %v1356
    %v1519 = vadd.f32 %v1518, %v1357
    %v1520 = vadd.f32 %v1519, %v1358
    %v1521 = vadd.f32 %v1520, %v1359
    %v1522 = vadd.f32 %v1521, %v1360
    %v1523 = vadd.f32 %v1522, %v1361
    %v1524 = vrot.slane %v1523, 4
    %v1525 = vadd.f32 %v1523, %v1524
    %v1526 = vrot.slane %v1525, 2
    %v1527 = vadd.f32 %v1525, %v1526
    %v1528 = vrot.slane %v1527, 1
    %v1529 = vadd.f32 %v1527, %v1528
    %v1530 = vmul.f32 %v1382, 0.0078125
    %v1531 = vmul.f32 %v1403, 0.0078125
    %v1532 = vmul.f32 %v1424, 0.0078125
    %v1533 = vmul.f32 %v1445, 0.0078125
    %v1534 = vmul.f32 %v1466, 0.0078125
    %v1535 = vmul.f32 %v1487, 0.0078125
    %v1536 = vmul.f32 %v1508, 0.0078125
    %v1537 = vmul.f32 %v1529, 0.0078125
    %v1538 = vld [vmem:[%s3] sm:$0xff]
    %v1539 = vld [vmem:[%s3 + $0x8] sm:$0xff]
    %v1540 = vld [vmem:[%s3 + $0x10] sm:$0xff]
    %v1541 = vld [vmem:[%s3 + $0x18] sm:$0xff]
    %v1542 = vld [vmem:[%s3 + $0x20] sm:$0xff]
    %v1543 = vld [vmem:[%s3 + $0x28] sm:$0xff]
    %v1544 = vld [vmem:[%s3 + $0x30] sm:$0xff]
    %v1545 = vld [vmem:[%s3 + $0x38] sm:$0xff]
    %v1546 = vld [vmem:[%s3 + $0x40] sm:$0xff]
    %v1547 = vld [vmem:[%s3 + $0x48] sm:$0xff]
    %v1548 = vld [vmem:[%s3 + $0x50] sm:$0xff]
    %v1549 = vld [vmem:[%s3 + $0x58] sm:$0xff]
    %v1550 = vld [vmem:[%s3 + $0x60] sm:$0xff]
    %v1551 = vld [vmem:[%s3 + $0x68] sm:$0xff]
    %v1552 = vld [vmem:[%s3 + $0x70] sm:$0xff]
    %v1553 = vld [vmem:[%s3 + $0x78] sm:$0xff]
    %v1554 = vld [vmem:[%s3 + $0x80] sm:$0xff]
    %v1555 = vld [vmem:[%s3 + $0x88] sm:$0xff]
    %v1556 = vld [vmem:[%s3 + $0x90] sm:$0xff]
    %v1557 = vld [vmem:[%s3 + $0x98] sm:$0xff]
    %v1558 = vld [vmem:[%s3 + $0xa0] sm:$0xff]
    %v1559 = vld [vmem:[%s3 + $0xa8] sm:$0xff]
    %v1560 = vld [vmem:[%s3 + $0xb0] sm:$0xff]
    %v1561 = vld [vmem:[%s3 + $0xb8] sm:$0xff]
    %v1562 = vld [vmem:[%s3 + $0xc0] sm:$0xff]
    %v1563 = vld [vmem:[%s3 + $0xc8] sm:$0xff]
    %v1564 = vld [vmem:[%s3 + $0xd0] sm:$0xff]
    %v1565 = vld [vmem:[%s3 + $0xd8] sm:$0xff]
    %v1566 = vld [vmem:[%s3 + $0xe0] sm:$0xff]
    %v1567 = vld [vmem:[%s3 + $0xe8] sm:$0xff]
    %v1568 = vld [vmem:[%s3 + $0xf0] sm:$0xff]
    %v1569 = vld [vmem:[%s3 + $0xf8] sm:$0xff]
    %v1570 = vld [vmem:[%s4] sm:$0x3]
    %v1572 = vlaneseq
    %v1573 = vshrl.u32 %v1572, 7
    %v1574 = vsub.s32 0, %v1573
    %v1575 = vrot.slane %v1570, %v1574
    %v1576 = vlaneseq
    %v1577 = vshrl.u32 %v1576, 7
    %v1578 = vsub.s32 1, %v1577
    %v1579 = vrot.slane %v1570, %v1578
    %vm1590 = vcmask 1041409
    %v1591 = vsel %vm1590, %v1531, %v1530
    %vm1592 = vcmask 1042434
    %v1593 = vsel %vm1592, %v1532, %v1591
    %vm1594 = vcmask 1043459
    %v1595 = vsel %vm1594, %v1533, %v1593
    %vm1596 = vcmask 1044484
    %v1597 = vsel %vm1596, %v1534, %v1595
    %vm1598 = vcmask 1045509
    %v1599 = vsel %vm1598, %v1535, %v1597
    %vm1600 = vcmask 1046534
    %v1601 = vsel %vm1600, %v1536, %v1599
    %vm1602 = vcmask 1047559
    %v1603 = vsel %vm1602, %v1537, %v1601
    %1605 = vmatprep.subr.mxu0 %v1539
    %1606 = vmatpush1.msra.mxu0 %v1538
    %1607 = vmatprep.subr.mxu0 %v1541
    %1608 = vmatpush1.msra.mxu0 %v1540
    %1609 = vmatprep.subr.mxu0 %v1543
    %1610 = vmatpush1.msra.mxu0 %v1542
    %1611 = vmatprep.subr.mxu0 %v1545
    %1612 = vmatpush1.msra.mxu0 %v1544
    %1613 = vmatprep.subr.mxu0 %v1547
    %1614 = vmatpush1.msra.mxu0 %v1546
    %1615 = vmatprep.subr.mxu0 %v1549
    %1616 = vmatpush1.msra.mxu0 %v1548
    %1617 = vmatprep.subr.mxu0 %v1551
    %1618 = vmatpush1.msra.mxu0 %v1550
    %1619 = vmatprep.subr.mxu0 %v1553
    %1620 = vmatpush1.msra.mxu0 %v1552
    %1621 = vmatprep.subr.mxu0 %v1555
    %1622 = vmatpush1.msra.mxu0 %v1554
    %1623 = vmatprep.subr.mxu0 %v1557
    %1624 = vmatpush1.msra.mxu0 %v1556
    %1625 = vmatprep.subr.mxu0 %v1559
    %1626 = vmatpush1.msra.mxu0 %v1558
    %1627 = vmatprep.subr.mxu0 %v1561
    %1628 = vmatpush1.msra.mxu0 %v1560
    %1629 = vmatprep.subr.mxu0 %v1563
    %1630 = vmatpush1.msra.mxu0 %v1562
    %1631 = vmatprep.subr.mxu0 %v1565
    %1632 = vmatpush1.msra.mxu0 %v1564
    %1633 = vmatprep.subr.mxu0 %v1567
    %1634 = vmatpush1.msra.mxu0 %v1566
    %1635 = vmatprep.subr.mxu0 %v1569
    %1636 = vmatpush1.msra.mxu0 %v1568
    %1637 = vmatprep.subr.mxu0 0.0
    %1638 = vmatpush1.msra.mxu0 0.0
    %1639 = vmatprep.subr.mxu0 0.0
    %1640 = vmatpush1.msra.mxu0 0.0
    %1641 = vmatprep.subr.mxu0 0.0
    %1642 = vmatpush1.msra.mxu0 0.0
    %1643 = vmatprep.subr.mxu0 0.0
    %1644 = vmatpush1.msra.mxu0 0.0
    %1645 = vmatprep.subr.mxu0 0.0
    %1646 = vmatpush1.msra.mxu0 0.0
    %1647 = vmatprep.subr.mxu0 0.0
    %1648 = vmatpush1.msra.mxu0 0.0
    %1649 = vmatprep.subr.mxu0 0.0
    %1650 = vmatpush1.msra.mxu0 0.0
    %1651 = vmatprep.subr.mxu0 0.0
    %1652 = vmatpush1.msra.mxu0 0.0
    %1653 = vmatprep.subr.mxu0 0.0
    %1654 = vmatpush1.msra.mxu0 0.0
    %1655 = vmatprep.subr.mxu0 0.0
    %1656 = vmatpush1.msra.mxu0 0.0
    %1657 = vmatprep.subr.mxu0 0.0
    %1658 = vmatpush1.msra.mxu0 0.0
    %1659 = vmatprep.subr.mxu0 0.0
    %1660 = vmatpush1.msra.mxu0 0.0
    %1661 = vmatprep.subr.mxu0 0.0
    %1662 = vmatpush1.msra.mxu0 0.0
    %1663 = vmatprep.subr.mxu0 0.0
    %1664 = vmatpush1.msra.mxu0 0.0
    %1665 = vmatprep.subr.mxu0 0.0
    %1666 = vmatpush1.msra.mxu0 0.0
    %1667 = vmatprep.subr.mxu0 0.0
    %1668 = vmatpush1.msra.mxu0 0.0
    %1669 = vmatprep.mubr.f32.mxu0 0.0
    %1670 = vmatmul.mubr.f32.gmra.mrb[0].mxu0 %v1603
    %v1671 = vpop.f32.mrb[0].mxu0
    %v1672 = vadd.f32 %v1575, %v1671
    %v1673 = vpop.f32.mrb[0].mxu0
    %v1674 = vadd.f32 %v1579, %v1673
    %1675 = vdwg.mxu0
    %v1676 = vmul.f32 %v1672, %v1672
    %v1677 = vmul.f32 %v1674, %v1674
    %v1678 = vadd.f32 %v1676, %v1677
    %1679 = vadd.xlane.f32.xlu0 %v1678
    %v1680 = vpop.xlane.xlu0 %1679
    %v1681 = vadd.f32 %v1680, 1e-12
    %v1682 = vrsqrt.pop %v1681
    %v1683 = vmul.f32 %v1672, %v1682
    %v1684 = vmul.f32 %v1674, %v1682
    %v1685 = vld [vmem:[%s5] sm:$0xff]
    %v1686 = vld [vmem:[%s5 + $0x8] sm:$0xff]
    %v1687 = vld [vmem:[%s5 + $0x10] sm:$0xff]
    %v1688 = vld [vmem:[%s5 + $0x18] sm:$0xff]
    %v1689 = vld [vmem:[%s5 + $0x20] sm:$0xff]
    %v1690 = vld [vmem:[%s5 + $0x28] sm:$0xff]
    %v1691 = vld [vmem:[%s5 + $0x30] sm:$0xff]
    %v1692 = vld [vmem:[%s5 + $0x38] sm:$0xff]
    %v1693 = vld [vmem:[%s5 + $0x40] sm:$0xff]
    %v1694 = vld [vmem:[%s5 + $0x48] sm:$0xff]
    %v1695 = vld [vmem:[%s5 + $0x50] sm:$0xff]
    %v1696 = vld [vmem:[%s5 + $0x58] sm:$0xff]
    %v1697 = vld [vmem:[%s5 + $0x60] sm:$0xff]
    %v1698 = vld [vmem:[%s5 + $0x68] sm:$0xff]
    %v1699 = vld [vmem:[%s5 + $0x70] sm:$0xff]
    %v1700 = vld [vmem:[%s5 + $0x78] sm:$0xff]
    %v1701 = vld [vmem:[%s5 + $0x80] sm:$0xff]
    %v1702 = vld [vmem:[%s5 + $0x88] sm:$0xff]
    %v1703 = vld [vmem:[%s5 + $0x90] sm:$0xff]
    %v1704 = vld [vmem:[%s5 + $0x98] sm:$0xff]
    %v1705 = vld [vmem:[%s5 + $0xa0] sm:$0xff]
    %v1706 = vld [vmem:[%s5 + $0xa8] sm:$0xff]
    %v1707 = vld [vmem:[%s5 + $0xb0] sm:$0xff]
    %v1708 = vld [vmem:[%s5 + $0xb8] sm:$0xff]
    %v1709 = vld [vmem:[%s5 + $0xc0] sm:$0xff]
    %v1710 = vld [vmem:[%s5 + $0xc8] sm:$0xff]
    %v1711 = vld [vmem:[%s5 + $0xd0] sm:$0xff]
    %v1712 = vld [vmem:[%s5 + $0xd8] sm:$0xff]
    %v1713 = vld [vmem:[%s5 + $0xe0] sm:$0xff]
    %v1714 = vld [vmem:[%s5 + $0xe8] sm:$0xff]
    %v1715 = vld [vmem:[%s5 + $0xf0] sm:$0xff]
    %v1716 = vld [vmem:[%s5 + $0xf8] sm:$0xff]
    %1717 = vmatprep.subr.mxu0 0.0
    %1718 = vmatpush1.msra.mxu0 %v1685
    %1719 = vmatprep.subr.mxu0 0.0
    %1720 = vmatpush1.msra.mxu0 %v1686
    %1721 = vmatprep.subr.mxu0 0.0
    %1722 = vmatpush1.msra.mxu0 %v1687
    %1723 = vmatprep.subr.mxu0 0.0
    %1724 = vmatpush1.msra.mxu0 %v1688
    %1725 = vmatprep.subr.mxu0 0.0
    %1726 = vmatpush1.msra.mxu0 %v1689
    %1727 = vmatprep.subr.mxu0 0.0
    %1728 = vmatpush1.msra.mxu0 %v1690
    %1729 = vmatprep.subr.mxu0 0.0
    %1730 = vmatpush1.msra.mxu0 %v1691
    %1731 = vmatprep.subr.mxu0 0.0
    %1732 = vmatpush1.msra.mxu0 %v1692
    %1733 = vmatprep.subr.mxu0 0.0
    %1734 = vmatpush1.msra.mxu0 %v1693
    %1735 = vmatprep.subr.mxu0 0.0
    %1736 = vmatpush1.msra.mxu0 %v1694
    %1737 = vmatprep.subr.mxu0 0.0
    %1738 = vmatpush1.msra.mxu0 %v1695
    %1739 = vmatprep.subr.mxu0 0.0
    %1740 = vmatpush1.msra.mxu0 %v1696
    %1741 = vmatprep.subr.mxu0 0.0
    %1742 = vmatpush1.msra.mxu0 %v1697
    %1743 = vmatprep.subr.mxu0 0.0
    %1744 = vmatpush1.msra.mxu0 %v1698
    %1745 = vmatprep.subr.mxu0 0.0
    %1746 = vmatpush1.msra.mxu0 %v1699
    %1747 = vmatprep.subr.mxu0 0.0
    %1748 = vmatpush1.msra.mxu0 %v1700
    %1749 = vmatprep.subr.mxu0 0.0
    %1750 = vmatpush1.msra.mxu0 %v1701
    %1751 = vmatprep.subr.mxu0 0.0
    %1752 = vmatpush1.msra.mxu0 %v1702
    %1753 = vmatprep.subr.mxu0 0.0
    %1754 = vmatpush1.msra.mxu0 %v1703
    %1755 = vmatprep.subr.mxu0 0.0
    %1756 = vmatpush1.msra.mxu0 %v1704
    %1757 = vmatprep.subr.mxu0 0.0
    %1758 = vmatpush1.msra.mxu0 %v1705
    %1759 = vmatprep.subr.mxu0 0.0
    %1760 = vmatpush1.msra.mxu0 %v1706
    %1761 = vmatprep.subr.mxu0 0.0
    %1762 = vmatpush1.msra.mxu0 %v1707
    %1763 = vmatprep.subr.mxu0 0.0
    %1764 = vmatpush1.msra.mxu0 %v1708
    %1765 = vmatprep.subr.mxu0 0.0
    %1766 = vmatpush1.msra.mxu0 %v1709
    %1767 = vmatprep.subr.mxu0 0.0
    %1768 = vmatpush1.msra.mxu0 %v1710
    %1769 = vmatprep.subr.mxu0 0.0
    %1770 = vmatpush1.msra.mxu0 %v1711
    %1771 = vmatprep.subr.mxu0 0.0
    %1772 = vmatpush1.msra.mxu0 %v1712
    %1773 = vmatprep.subr.mxu0 0.0
    %1774 = vmatpush1.msra.mxu0 %v1713
    %1775 = vmatprep.subr.mxu0 0.0
    %1776 = vmatpush1.msra.mxu0 %v1714
    %1777 = vmatprep.subr.mxu0 0.0
    %1778 = vmatpush1.msra.mxu0 %v1715
    %1779 = vmatprep.subr.mxu0 0.0
    %1780 = vmatpush1.msra.mxu0 %v1716
    %1781 = vmatprep.mubr.f32.mxu0 %v1684
    %1782 = vmatmul.mubr.f32.gmra.mrb[0].mxu0 %v1683
    %v1783 = vpop.f32.mrb[0].mxu0
    %v1784 = vadd.f32 0.0, %v1783
    %v1785 = vpop.f32.mrb[0].mxu0
    %1786 = vdwg.mxu0
    %v1787 = vmul.f32 %v1784, 30.0
    %1788 = vst [vmem:[#allocation2] sm:$0xff] %v1787
    // Predicated region
    $region26: #{model_forward.1} parent=1 // pred_check
      _
    $region27: #{model_forward.1} parent=1 // pred_check_branch
      %1790 = sbr.rel (0) target = $region29
    $region28: #{model_forward.1} parent=1 // pred_region
      %s1792 = ssub.s32 128, 128
      %1793 = vsyncadd [#allocation3], %s1792
      %s1795 = sshll.u32 [#allocation2], 4
      %s1796 = int_to_ptr.vmem [resolvable:$true] %s1795
      %1798 = dma.vmem_to_hbm [thread:$0]  %s1796, 128, %s6, [#allocation3]
    $region29: #{model_forward.1} parent=1 // pred_fallthru
      _
    // Predicated region
    $region30: #{model_forward.1} parent=1 // pred_check
      _
    $region31: #{model_forward.1} parent=1 // pred_check_branch
      %1800 = sbr.rel (0) target = $region33
    $region32: #{model_forward.1} parent=1 // pred_region
      %1801 = dma.done [#allocation3], 128
    $region33: #{model_forward.1} parent=1 // pred_fallthru
      _
    %1802 = vsyncpa [#allocation3], 1

</llo_original>
